<compile_context>
chip_gen: v6e
topology: v6e:2x2x1
jax: 0.10.0
libtpu: 0.0.40
codegen_flags: <defaults>
</compile_context>

<pallas_src>
import functools

import jax
import jax.numpy as jnp
from jax.experimental import pallas as pl
from jax.experimental.pallas import tpu as pltpu

HIDDEN = 32
DEPTH = 6
NUM_CLASSES = 10
IN_FEATURES = 784
BN_EPS = 1e-5
OUT_PAD = 128          # lane-dense output width (>= NUM_CLASSES)
TILE_B_MAX = 1024      # batch rows per grid step


def _round_up(n, m):
    return ((n + m - 1) // m) * m


def _bn_relu(h, gamma, beta, mask, inv_n):
    """Training-mode BatchNorm1d + ReLU in f32, single-pass batch statistics.

    h:     (B_pad, HIDDEN) f32
    gamma: (1, HIDDEN)     f32   (pre-shaped, no per-layer broadcast needed)
    beta:  (1, HIDDEN)     f32
    mask:  (B_pad, 1)      f32   (1.0 for real rows, 0.0 for padded rows)
    inv_n: python float, 1 / real_batch_size
    """
    hm = h * mask
    s1 = jnp.sum(hm, axis=0, keepdims=True)        # sum(h)
    s2 = jnp.sum(hm * h, axis=0, keepdims=True)    # sum(h^2) (mask applied once)
    mean = s1 * inv_n
    var = s2 * inv_n - mean * mean                 # biased variance (torch train)
    h_hat = (h - mean) * jax.lax.rsqrt(var + BN_EPS)
    return jnp.maximum(h_hat * gamma + beta, 0.0)


def mlp_kernel(depth, n_valid, tile_b,
               x_ref, w0_ref, wh_ref, gamma_ref, beta_ref, fcw_ref, fcb_ref,
               out_ref, h0_scr):
    i = pl.program_id(0)

    # ---- Layer 0 (784 -> hidden) on this batch tile: bf16 MXU, f32 acc. ----
    h0_tile = jnp.dot(x_ref[...], w0_ref[...],
                      preferred_element_type=jnp.float32)
    row0 = pl.multiple_of(i * tile_b, tile_b)
    h0_scr[pl.ds(row0, tile_b), :] = h0_tile

    # ---- Last grid step: batch-wide BN/ReLU + hidden layers + final fc. ----
    @pl.when(i == pl.num_programs(0) - 1)
    def _():
        b_pad = h0_scr.shape[0]
        inv_n = 1.0 / n_valid
        mask = (jax.lax.broadcasted_iota(jnp.int32, (b_pad, 1), 0)
                < n_valid).astype(jnp.float32)

        h = _bn_relu(h0_scr[...], gamma_ref[0], beta_ref[0], mask, inv_n)
        for l in range(depth - 1):  # static unroll; depth is compile-time const
            hl = jnp.dot(h.astype(jnp.bfloat16), wh_ref[l],
                         preferred_element_type=jnp.float32)
            h = _bn_relu(hl, gamma_ref[l + 1], beta_ref[l + 1], mask, inv_n)

        # Final fc (hidden -> 128-padded classes): lane-dense unmasked store.
        out_ref[...] = (jnp.dot(h.astype(jnp.bfloat16), fcw_ref[...],
                                preferred_element_type=jnp.float32)
                        + fcb_ref[...])


def mlp_forward(x, params):
    """x: (B, C, H, W) float32 with C*H*W == 784.  Returns (B, NUM_CLASSES) f32."""
    b = x.shape[0]
    x2d = x.reshape(b, -1)                         # same as torch .view(B, -1)

    w0, wh, gamma, beta, fcw, fcb = params

    # Batch tiling / padding (padded rows are masked out of BN statistics).
    tile_b = min(TILE_B_MAX, _round_up(b, 8))
    b_pad = _round_up(b, tile_b)
    if b_pad != b:
        x2d = jnp.pad(x2d, ((0, b_pad - b), (0, 0)))

    # bf16 MXU operands (accumulation stays f32 inside the kernel).
    x_bf = x2d.astype(jnp.bfloat16)
    w0_bf = w0.astype(jnp.bfloat16)
    wh_bf = wh.astype(jnp.bfloat16)

    # Lane-dense (128-wide) final projection; sliced back to NUM_CLASSES below.
    fcw_p = jnp.zeros((HIDDEN, OUT_PAD), jnp.bfloat16).at[:, :NUM_CLASSES].set(
        fcw.astype(jnp.bfloat16))
    fcb_p = jnp.zeros((1, OUT_PAD), jnp.float32).at[:, :NUM_CLASSES].set(
        fcb.reshape(1, NUM_CLASSES).astype(jnp.float32))

    # Pre-shaped BN params -> gamma_ref[l] is already (1, HIDDEN).
    gamma3 = gamma.astype(jnp.float32).reshape(DEPTH, 1, HIDDEN)
    beta3 = beta.astype(jnp.float32).reshape(DEPTH, 1, HIDDEN)

    grid = (b_pad // tile_b,)
    kernel = functools.partial(mlp_kernel, DEPTH, b, tile_b)

    def _full(arr):
        # Untiled, VMEM-resident operand (same block for every grid step).
        n = arr.ndim
        return pl.BlockSpec(arr.shape, lambda i, _n=n: (0,) * _n)

    out_pad = pl.pallas_call(
        kernel,
        out_shape=jax.ShapeDtypeStruct((b_pad, OUT_PAD), jnp.float32),
        grid=grid,
        in_specs=[
            pl.BlockSpec((tile_b, IN_FEATURES), lambda i: (i, 0)),  # x batch tile
            _full(w0_bf), _full(wh_bf), _full(gamma3), _full(beta3),
            _full(fcw_p), _full(fcb_p),
        ],
        out_specs=pl.BlockSpec((b_pad, OUT_PAD), lambda i: (0, 0)),
        scratch_shapes=[pltpu.VMEM((b_pad, HIDDEN), jnp.float32)],
        compiler_params=pltpu.CompilerParams(
            # Full-batch BN on the last step depends on every earlier tile, so
            # this axis cannot be megacore-"parallel".
            dimension_semantics=("arbitrary",)),
    )(x_bf, w0_bf, wh_bf, gamma3, beta3, fcw_p, fcb_p)

    return out_pad[:b, :NUM_CLASSES]


def init_params(key):
    k0, k1, k2, k3 = jax.random.split(key, 4)
    # Linear weights (no bias) — stored as (in, out) = transpose of nn.Linear.
    w0 = jax.random.normal(k0, (IN_FEATURES, HIDDEN), jnp.float32) * (
        1.0 / jnp.sqrt(IN_FEATURES))
    wh = jax.random.normal(k1, (DEPTH - 1, HIDDEN, HIDDEN), jnp.float32) * (
        1.0 / jnp.sqrt(HIDDEN))
    # BatchNorm1d params: gamma=1, beta=0 (PyTorch default init).
    gamma = jnp.ones((DEPTH, HIDDEN), jnp.float32)
    beta = jnp.zeros((DEPTH, HIDDEN), jnp.float32)
    # Final fc with bias.
    fcw = jax.random.normal(k2, (HIDDEN, NUM_CLASSES), jnp.float32) * (
        1.0 / jnp.sqrt(HIDDEN))
    fcb = jax.random.normal(k3, (1, NUM_CLASSES), jnp.float32) * 0.01
    return (w0, wh, gamma, beta, fcw, fcb)


if __name__ == "__main__":
    key = jax.random.PRNGKey(0)
    kx, kp = jax.random.split(key)
    # Small deterministic input: batch=8, NCHW (8, 1, 28, 28) -> 784 features.
    x = jax.random.normal(kx, (8, 1, 28, 28), jnp.float32)
    params = init_params(kp)

    out = jax.block_until_ready(mlp_forward(x, params))
    assert out.shape == (8, NUM_CLASSES)
    assert bool(jnp.all(jnp.isfinite(out)))
    print("KERNEL_OK")
</pallas_src>

<mosaic_0001>
module attributes {stable_mosaic.version = 11 : i64} {
  func.func @mlp_kernel(%arg0: i32, %arg1: memref<8x784xbf16, #tpu.memory_space<vmem>>, %arg2: memref<784x32xbf16, #tpu.memory_space<vmem>>, %arg3: memref<5x32x32xbf16, #tpu.memory_space<vmem>>, %arg4: memref<6x1x32xf32, #tpu.memory_space<vmem>>, %arg5: memref<6x1x32xf32, #tpu.memory_space<vmem>>, %arg6: memref<32x128xbf16, #tpu.memory_space<vmem>>, %arg7: memref<1x128xf32, #tpu.memory_space<vmem>>, %arg8: memref<8x128xf32, #tpu.memory_space<vmem>>, %arg9: memref<8x32xf32, #tpu.memory_space<vmem>>) attributes {dimension_semantics = [#tpu.dimension_semantics<arbitrary>], iteration_bounds = array<i64: 1>, scalar_prefetch = 0 : i64, scratch_operands = 1 : i64, tpu.core_type = #tpu.core_type<tc>, window_params = [{transform_indices = @transform_0, window_bounds = array<i64: 8, 784>}, {pipeline_mode = #tpu.pipeline_mode<synchronous>, transform_indices = @transform_1, window_bounds = array<i64: 784, 32>}, {pipeline_mode = #tpu.pipeline_mode<synchronous>, transform_indices = @transform_2, window_bounds = array<i64: 5, 32, 32>}, {pipeline_mode = #tpu.pipeline_mode<synchronous>, transform_indices = @transform_3, window_bounds = array<i64: 6, 1, 32>}, {pipeline_mode = #tpu.pipeline_mode<synchronous>, transform_indices = @transform_4, window_bounds = array<i64: 6, 1, 32>}, {pipeline_mode = #tpu.pipeline_mode<synchronous>, transform_indices = @transform_5, window_bounds = array<i64: 32, 128>}, {pipeline_mode = #tpu.pipeline_mode<synchronous>, transform_indices = @transform_6, window_bounds = array<i64: 1, 128>}, {pipeline_mode = #tpu.pipeline_mode<synchronous>, transform_indices = @transform_7, window_bounds = array<i64: 8, 128>}]} {
    %c0 = arith.constant 0 : index
    %c0_0 = arith.constant 0 : index
    %0 = vector.load %arg1[%c0, %c0_0] : memref<8x784xbf16, #tpu.memory_space<vmem>>, vector<8x784xbf16>
    %c0_1 = arith.constant 0 : index
    %c0_2 = arith.constant 0 : index
    %1 = vector.load %arg2[%c0_1, %c0_2] : memref<784x32xbf16, #tpu.memory_space<vmem>>, vector<784x32xbf16>
    %cst = arith.constant dense<0.000000e+00> : vector<8x32xf32>
    %2 = tpu.matmul %0, %1, %cst {dimension_numbers = #tpu.dot_dimension_numbers<[1], [0], [0], [1], [0, 0, 1, 1], [], []>} : vector<8x784xbf16>, vector<784x32xbf16>, vector<8x32xf32> -> vector<8x32xf32>
    %c8_i32 = arith.constant 8 : i32
    %3 = arith.muli %arg0, %c8_i32 : i32
    %4 = tpu.assume_multiple %3, 8 : i32
    %5 = arith.index_cast %4 : i32 to index
    %c0_3 = arith.constant 0 : index
    %6 = vector.load %arg9[%5, %c0_3] : memref<8x32xf32, #tpu.memory_space<vmem>>, vector<8x32xf32>
    tpu.vector_store %arg9[%5, %c0_3], %2 {strides = array<i32>} : memref<8x32xf32, #tpu.memory_space<vmem>>, vector<8x32xf32>,
    %c0_i32 = arith.constant 0 : i32
    %7 = arith.cmpi eq, %arg0, %c0_i32 : i32
    %8 = arith.extui %7 : i1 to i32
    %c0_i32_4 = arith.constant 0 : i32
    %9 = arith.cmpi ne, %8, %c0_i32_4 : i32
    scf.if %9 {
      %10 = tpu.iota {dimensions = array<i32: 0>} : vector<8x1xi32>
      %c8_i32_5 = arith.constant 8 : i32
      %11 = vector.broadcast %c8_i32_5 : i32 to vector<8x1xi32>
      %12 = arith.cmpi slt, %10, %11 : vector<8x1xi32>
      %13 = arith.extui %12 : vector<8x1xi1> to vector<8x1xi32>
      %14 = arith.sitofp %13 : vector<8x1xi32> to vector<8x1xf32>
      %c0_6 = arith.constant 0 : index
      %c0_7 = arith.constant 0 : index
      %15 = vector.load %arg9[%c0_6, %c0_7] : memref<8x32xf32, #tpu.memory_space<vmem>>, vector<8x32xf32>
      %c0_8 = arith.constant 0 : index
      %c0_9 = arith.constant 0 : index
      %c0_10 = arith.constant 0 : index
      %16 = vector.load %arg4[%c0_8, %c0_9, %c0_10] : memref<6x1x32xf32, #tpu.memory_space<vmem>>, vector<1x1x32xf32>
      %17 = vector.shape_cast %16 : vector<1x1x32xf32> to vector<1x32xf32>
      %c0_11 = arith.constant 0 : index
      %c0_12 = arith.constant 0 : index
      %c0_13 = arith.constant 0 : index
      %18 = vector.load %arg5[%c0_11, %c0_12, %c0_13] : memref<6x1x32xf32, #tpu.memory_space<vmem>>, vector<1x1x32xf32>
      %19 = vector.shape_cast %18 : vector<1x1x32xf32> to vector<1x32xf32>
      %20 = vector.broadcast %14 : vector<8x1xf32> to vector<8x32xf32>
      %21 = arith.mulf %15, %20 : vector<8x32xf32>
      %cst_14 = arith.constant dense<0.000000e+00> : vector<32xf32>
      %22 = vector.multi_reduction <add>, %21, %cst_14 [0] : vector<8x32xf32> to vector<32xf32>
      %23 = vector.shape_cast %22 : vector<32xf32> to vector<1x32xf32>
      %24 = arith.mulf %21, %15 : vector<8x32xf32>
      %cst_15 = arith.constant dense<0.000000e+00> : vector<32xf32>
      %25 = vector.multi_reduction <add>, %24, %cst_15 [0] : vector<8x32xf32> to vector<32xf32>
      %26 = vector.shape_cast %25 : vector<32xf32> to vector<1x32xf32>
      %cst_16 = arith.constant 1.250000e-01 : f32
      %27 = vector.broadcast %cst_16 : f32 to vector<1x32xf32>
      %28 = arith.mulf %23, %27 : vector<1x32xf32>
      %cst_17 = arith.constant 1.250000e-01 : f32
      %29 = vector.broadcast %cst_17 : f32 to vector<1x32xf32>
      %30 = arith.mulf %26, %29 : vector<1x32xf32>
      %31 = arith.mulf %28, %28 : vector<1x32xf32>
      %32 = arith.subf %30, %31 : vector<1x32xf32>
      %33 = vector.broadcast %28 : vector<1x32xf32> to vector<8x32xf32>
      %34 = arith.subf %15, %33 : vector<8x32xf32>
      %cst_18 = arith.constant 9.99999974E-6 : f32
      %35 = vector.broadcast %cst_18 : f32 to vector<1x32xf32>
      %36 = arith.addf %32, %35 : vector<1x32xf32>
      %37 = math.rsqrt %36 : vector<1x32xf32>
      %38 = vector.broadcast %37 : vector<1x32xf32> to vector<8x32xf32>
      %39 = arith.mulf %34, %38 : vector<8x32xf32>
      %40 = vector.broadcast %17 : vector<1x32xf32> to vector<8x32xf32>
      %41 = arith.mulf %39, %40 : vector<8x32xf32>
      %42 = vector.broadcast %19 : vector<1x32xf32> to vector<8x32xf32>
      %43 = arith.addf %41, %42 : vector<8x32xf32>
      %cst_19 = arith.constant 0.000000e+00 : f32
      %44 = vector.broadcast %cst_19 : f32 to vector<8x32xf32>
      %45 = arith.maximumf %43, %44 : vector<8x32xf32>
      %46 = arith.truncf %45 : vector<8x32xf32> to vector<8x32xbf16>
      %c0_20 = arith.constant 0 : index
      %c0_21 = arith.constant 0 : index
      %c0_22 = arith.constant 0 : index
      %47 = vector.load %arg3[%c0_20, %c0_21, %c0_22] : memref<5x32x32xbf16, #tpu.memory_space<vmem>>, vector<1x32x32xbf16>
      %48 = vector.shape_cast %47 : vector<1x32x32xbf16> to vector<32x32xbf16>
      %cst_23 = arith.constant dense<0.000000e+00> : vector<8x32xf32>
      %49 = tpu.matmul %46, %48, %cst_23 {dimension_numbers = #tpu.dot_dimension_numbers<[1], [0], [0], [1], [0, 0, 1, 1], [], []>} : vector<8x32xbf16>, vector<32x32xbf16>, vector<8x32xf32> -> vector<8x32xf32>
      %c1 = arith.constant 1 : index
      %c0_24 = arith.constant 0 : index
      %c0_25 = arith.constant 0 : index
      %50 = vector.load %arg4[%c1, %c0_24, %c0_25] : memref<6x1x32xf32, #tpu.memory_space<vmem>>, vector<1x1x32xf32>
      %51 = vector.shape_cast %50 : vector<1x1x32xf32> to vector<1x32xf32>
      %c1_26 = arith.constant 1 : index
      %c0_27 = arith.constant 0 : index
      %c0_28 = arith.constant 0 : index
      %52 = vector.load %arg5[%c1_26, %c0_27, %c0_28] : memref<6x1x32xf32, #tpu.memory_space<vmem>>, vector<1x1x32xf32>
      %53 = vector.shape_cast %52 : vector<1x1x32xf32> to vector<1x32xf32>
      %54 = vector.broadcast %14 : vector<8x1xf32> to vector<8x32xf32>
      %55 = arith.mulf %49, %54 : vector<8x32xf32>
      %cst_29 = arith.constant dense<0.000000e+00> : vector<32xf32>
      %56 = vector.multi_reduction <add>, %55, %cst_29 [0] : vector<8x32xf32> to vector<32xf32>
      %57 = vector.shape_cast %56 : vector<32xf32> to vector<1x32xf32>
      %58 = arith.mulf %55, %49 : vector<8x32xf32>
      %cst_30 = arith.constant dense<0.000000e+00> : vector<32xf32>
      %59 = vector.multi_reduction <add>, %58, %cst_30 [0] : vector<8x32xf32> to vector<32xf32>
      %60 = vector.shape_cast %59 : vector<32xf32> to vector<1x32xf32>
      %cst_31 = arith.constant 1.250000e-01 : f32
      %61 = vector.broadcast %cst_31 : f32 to vector<1x32xf32>
      %62 = arith.mulf %57, %61 : vector<1x32xf32>
      %cst_32 = arith.constant 1.250000e-01 : f32
      %63 = vector.broadcast %cst_32 : f32 to vector<1x32xf32>
      %64 = arith.mulf %60, %63 : vector<1x32xf32>
      %65 = arith.mulf %62, %62 : vector<1x32xf32>
      %66 = arith.subf %64, %65 : vector<1x32xf32>
      %67 = vector.broadcast %62 : vector<1x32xf32> to vector<8x32xf32>
      %68 = arith.subf %49, %67 : vector<8x32xf32>
      %cst_33 = arith.constant 9.99999974E-6 : f32
      %69 = vector.broadcast %cst_33 : f32 to vector<1x32xf32>
      %70 = arith.addf %66, %69 : vector<1x32xf32>
      %71 = math.rsqrt %70 : vector<1x32xf32>
      %72 = vector.broadcast %71 : vector<1x32xf32> to vector<8x32xf32>
      %73 = arith.mulf %68, %72 : vector<8x32xf32>
      %74 = vector.broadcast %51 : vector<1x32xf32> to vector<8x32xf32>
      %75 = arith.mulf %73, %74 : vector<8x32xf32>
      %76 = vector.broadcast %53 : vector<1x32xf32> to vector<8x32xf32>
      %77 = arith.addf %75, %76 : vector<8x32xf32>
      %cst_34 = arith.constant 0.000000e+00 : f32
      %78 = vector.broadcast %cst_34 : f32 to vector<8x32xf32>
      %79 = arith.maximumf %77, %78 : vector<8x32xf32>
      %80 = arith.truncf %79 : vector<8x32xf32> to vector<8x32xbf16>
      %c1_35 = arith.constant 1 : index
      %c0_36 = arith.constant 0 : index
      %c0_37 = arith.constant 0 : index
      %81 = vector.load %arg3[%c1_35, %c0_36, %c0_37] : memref<5x32x32xbf16, #tpu.memory_space<vmem>>, vector<1x32x32xbf16>
      %82 = vector.shape_cast %81 : vector<1x32x32xbf16> to vector<32x32xbf16>
      %cst_38 = arith.constant dense<0.000000e+00> : vector<8x32xf32>
      %83 = tpu.matmul %80, %82, %cst_38 {dimension_numbers = #tpu.dot_dimension_numbers<[1], [0], [0], [1], [0, 0, 1, 1], [], []>} : vector<8x32xbf16>, vector<32x32xbf16>, vector<8x32xf32> -> vector<8x32xf32>
      %c2 = arith.constant 2 : index
      %c0_39 = arith.constant 0 : index
      %c0_40 = arith.constant 0 : index
      %84 = vector.load %arg4[%c2, %c0_39, %c0_40] : memref<6x1x32xf32, #tpu.memory_space<vmem>>, vector<1x1x32xf32>
      %85 = vector.shape_cast %84 : vector<1x1x32xf32> to vector<1x32xf32>
      %c2_41 = arith.constant 2 : index
      %c0_42 = arith.constant 0 : index
      %c0_43 = arith.constant 0 : index
      %86 = vector.load %arg5[%c2_41, %c0_42, %c0_43] : memref<6x1x32xf32, #tpu.memory_space<vmem>>, vector<1x1x32xf32>
      %87 = vector.shape_cast %86 : vector<1x1x32xf32> to vector<1x32xf32>
      %88 = vector.broadcast %14 : vector<8x1xf32> to vector<8x32xf32>
      %89 = arith.mulf %83, %88 : vector<8x32xf32>
      %cst_44 = arith.constant dense<0.000000e+00> : vector<32xf32>
      %90 = vector.multi_reduction <add>, %89, %cst_44 [0] : vector<8x32xf32> to vector<32xf32>
      %91 = vector.shape_cast %90 : vector<32xf32> to vector<1x32xf32>
      %92 = arith.mulf %89, %83 : vector<8x32xf32>
      %cst_45 = arith.constant dense<0.000000e+00> : vector<32xf32>
      %93 = vector.multi_reduction <add>, %92, %cst_45 [0] : vector<8x32xf32> to vector<32xf32>
      %94 = vector.shape_cast %93 : vector<32xf32> to vector<1x32xf32>
      %cst_46 = arith.constant 1.250000e-01 : f32
      %95 = vector.broadcast %cst_46 : f32 to vector<1x32xf32>
      %96 = arith.mulf %91, %95 : vector<1x32xf32>
      %cst_47 = arith.constant 1.250000e-01 : f32
      %97 = vector.broadcast %cst_47 : f32 to vector<1x32xf32>
      %98 = arith.mulf %94, %97 : vector<1x32xf32>
      %99 = arith.mulf %96, %96 : vector<1x32xf32>
      %100 = arith.subf %98, %99 : vector<1x32xf32>
      %101 = vector.broadcast %96 : vector<1x32xf32> to vector<8x32xf32>
      %102 = arith.subf %83, %101 : vector<8x32xf32>
      %cst_48 = arith.constant 9.99999974E-6 : f32
      %103 = vector.broadcast %cst_48 : f32 to vector<1x32xf32>
      %104 = arith.addf %100, %103 : vector<1x32xf32>
      %105 = math.rsqrt %104 : vector<1x32xf32>
      %106 = vector.broadcast %105 : vector<1x32xf32> to vector<8x32xf32>
      %107 = arith.mulf %102, %106 : vector<8x32xf32>
      %108 = vector.broadcast %85 : vector<1x32xf32> to vector<8x32xf32>
      %109 = arith.mulf %107, %108 : vector<8x32xf32>
      %110 = vector.broadcast %87 : vector<1x32xf32> to vector<8x32xf32>
      %111 = arith.addf %109, %110 : vector<8x32xf32>
      %cst_49 = arith.constant 0.000000e+00 : f32
      %112 = vector.broadcast %cst_49 : f32 to vector<8x32xf32>
      %113 = arith.maximumf %111, %112 : vector<8x32xf32>
      %114 = arith.truncf %113 : vector<8x32xf32> to vector<8x32xbf16>
      %c2_50 = arith.constant 2 : index
      %c0_51 = arith.constant 0 : index
      %c0_52 = arith.constant 0 : index
      %115 = vector.load %arg3[%c2_50, %c0_51, %c0_52] : memref<5x32x32xbf16, #tpu.memory_space<vmem>>, vector<1x32x32xbf16>
      %116 = vector.shape_cast %115 : vector<1x32x32xbf16> to vector<32x32xbf16>
      %cst_53 = arith.constant dense<0.000000e+00> : vector<8x32xf32>
      %117 = tpu.matmul %114, %116, %cst_53 {dimension_numbers = #tpu.dot_dimension_numbers<[1], [0], [0], [1], [0, 0, 1, 1], [], []>} : vector<8x32xbf16>, vector<32x32xbf16>, vector<8x32xf32> -> vector<8x32xf32>
      %c3 = arith.constant 3 : index
      %c0_54 = arith.constant 0 : index
      %c0_55 = arith.constant 0 : index
      %118 = vector.load %arg4[%c3, %c0_54, %c0_55] : memref<6x1x32xf32, #tpu.memory_space<vmem>>, vector<1x1x32xf32>
      %119 = vector.shape_cast %118 : vector<1x1x32xf32> to vector<1x32xf32>
      %c3_56 = arith.constant 3 : index
      %c0_57 = arith.constant 0 : index
      %c0_58 = arith.constant 0 : index
      %120 = vector.load %arg5[%c3_56, %c0_57, %c0_58] : memref<6x1x32xf32, #tpu.memory_space<vmem>>, vector<1x1x32xf32>
      %121 = vector.shape_cast %120 : vector<1x1x32xf32> to vector<1x32xf32>
      %122 = vector.broadcast %14 : vector<8x1xf32> to vector<8x32xf32>
      %123 = arith.mulf %117, %122 : vector<8x32xf32>
      %cst_59 = arith.constant dense<0.000000e+00> : vector<32xf32>
      %124 = vector.multi_reduction <add>, %123, %cst_59 [0] : vector<8x32xf32> to vector<32xf32>
      %125 = vector.shape_cast %124 : vector<32xf32> to vector<1x32xf32>
      %126 = arith.mulf %123, %117 : vector<8x32xf32>
      %cst_60 = arith.constant dense<0.000000e+00> : vector<32xf32>
      %127 = vector.multi_reduction <add>, %126, %cst_60 [0] : vector<8x32xf32> to vector<32xf32>
      %128 = vector.shape_cast %127 : vector<32xf32> to vector<1x32xf32>
      %cst_61 = arith.constant 1.250000e-01 : f32
      %129 = vector.broadcast %cst_61 : f32 to vector<1x32xf32>
      %130 = arith.mulf %125, %129 : vector<1x32xf32>
      %cst_62 = arith.constant 1.250000e-01 : f32
      %131 = vector.broadcast %cst_62 : f32 to vector<1x32xf32>
      %132 = arith.mulf %128, %131 : vector<1x32xf32>
      %133 = arith.mulf %130, %130 : vector<1x32xf32>
      %134 = arith.subf %132, %133 : vector<1x32xf32>
      %135 = vector.broadcast %130 : vector<1x32xf32> to vector<8x32xf32>
      %136 = arith.subf %117, %135 : vector<8x32xf32>
      %cst_63 = arith.constant 9.99999974E-6 : f32
      %137 = vector.broadcast %cst_63 : f32 to vector<1x32xf32>
      %138 = arith.addf %134, %137 : vector<1x32xf32>
      %139 = math.rsqrt %138 : vector<1x32xf32>
      %140 = vector.broadcast %139 : vector<1x32xf32> to vector<8x32xf32>
      %141 = arith.mulf %136, %140 : vector<8x32xf32>
      %142 = vector.broadcast %119 : vector<1x32xf32> to vector<8x32xf32>
      %143 = arith.mulf %141, %142 : vector<8x32xf32>
      %144 = vector.broadcast %121 : vector<1x32xf32> to vector<8x32xf32>
      %145 = arith.addf %143, %144 : vector<8x32xf32>
      %cst_64 = arith.constant 0.000000e+00 : f32
      %146 = vector.broadcast %cst_64 : f32 to vector<8x32xf32>
      %147 = arith.maximumf %145, %146 : vector<8x32xf32>
      %148 = arith.truncf %147 : vector<8x32xf32> to vector<8x32xbf16>
      %c3_65 = arith.constant 3 : index
      %c0_66 = arith.constant 0 : index
      %c0_67 = arith.constant 0 : index
      %149 = vector.load %arg3[%c3_65, %c0_66, %c0_67] : memref<5x32x32xbf16, #tpu.memory_space<vmem>>, vector<1x32x32xbf16>
      %150 = vector.shape_cast %149 : vector<1x32x32xbf16> to vector<32x32xbf16>
      %cst_68 = arith.constant dense<0.000000e+00> : vector<8x32xf32>
      %151 = tpu.matmul %148, %150, %cst_68 {dimension_numbers = #tpu.dot_dimension_numbers<[1], [0], [0], [1], [0, 0, 1, 1], [], []>} : vector<8x32xbf16>, vector<32x32xbf16>, vector<8x32xf32> -> vector<8x32xf32>
      %c4 = arith.constant 4 : index
      %c0_69 = arith.constant 0 : index
      %c0_70 = arith.constant 0 : index
      %152 = vector.load %arg4[%c4, %c0_69, %c0_70] : memref<6x1x32xf32, #tpu.memory_space<vmem>>, vector<1x1x32xf32>
      %153 = vector.shape_cast %152 : vector<1x1x32xf32> to vector<1x32xf32>
      %c4_71 = arith.constant 4 : index
      %c0_72 = arith.constant 0 : index
      %c0_73 = arith.constant 0 : index
      %154 = vector.load %arg5[%c4_71, %c0_72, %c0_73] : memref<6x1x32xf32, #tpu.memory_space<vmem>>, vector<1x1x32xf32>
      %155 = vector.shape_cast %154 : vector<1x1x32xf32> to vector<1x32xf32>
      %156 = vector.broadcast %14 : vector<8x1xf32> to vector<8x32xf32>
      %157 = arith.mulf %151, %156 : vector<8x32xf32>
      %cst_74 = arith.constant dense<0.000000e+00> : vector<32xf32>
      %158 = vector.multi_reduction <add>, %157, %cst_74 [0] : vector<8x32xf32> to vector<32xf32>
      %159 = vector.shape_cast %158 : vector<32xf32> to vector<1x32xf32>
      %160 = arith.mulf %157, %151 : vector<8x32xf32>
      %cst_75 = arith.constant dense<0.000000e+00> : vector<32xf32>
      %161 = vector.multi_reduction <add>, %160, %cst_75 [0] : vector<8x32xf32> to vector<32xf32>
      %162 = vector.shape_cast %161 : vector<32xf32> to vector<1x32xf32>
      %cst_76 = arith.constant 1.250000e-01 : f32
      %163 = vector.broadcast %cst_76 : f32 to vector<1x32xf32>
      %164 = arith.mulf %159, %163 : vector<1x32xf32>
      %cst_77 = arith.constant 1.250000e-01 : f32
      %165 = vector.broadcast %cst_77 : f32 to vector<1x32xf32>
      %166 = arith.mulf %162, %165 : vector<1x32xf32>
      %167 = arith.mulf %164, %164 : vector<1x32xf32>
      %168 = arith.subf %166, %167 : vector<1x32xf32>
      %169 = vector.broadcast %164 : vector<1x32xf32> to vector<8x32xf32>
      %170 = arith.subf %151, %169 : vector<8x32xf32>
      %cst_78 = arith.constant 9.99999974E-6 : f32
      %171 = vector.broadcast %cst_78 : f32 to vector<1x32xf32>
      %172 = arith.addf %168, %171 : vector<1x32xf32>
      %173 = math.rsqrt %172 : vector<1x32xf32>
      %174 = vector.broadcast %173 : vector<1x32xf32> to vector<8x32xf32>
      %175 = arith.mulf %170, %174 : vector<8x32xf32>
      %176 = vector.broadcast %153 : vector<1x32xf32> to vector<8x32xf32>
      %177 = arith.mulf %175, %176 : vector<8x32xf32>
      %178 = vector.broadcast %155 : vector<1x32xf32> to vector<8x32xf32>
      %179 = arith.addf %177, %178 : vector<8x32xf32>
      %cst_79 = arith.constant 0.000000e+00 : f32
      %180 = vector.broadcast %cst_79 : f32 to vector<8x32xf32>
      %181 = arith.maximumf %179, %180 : vector<8x32xf32>
      %182 = arith.truncf %181 : vector<8x32xf32> to vector<8x32xbf16>
      %c4_80 = arith.constant 4 : index
      %c0_81 = arith.constant 0 : index
      %c0_82 = arith.constant 0 : index
      %183 = vector.load %arg3[%c4_80, %c0_81, %c0_82] : memref<5x32x32xbf16, #tpu.memory_space<vmem>>, vector<1x32x32xbf16>
      %184 = vector.shape_cast %183 : vector<1x32x32xbf16> to vector<32x32xbf16>
      %cst_83 = arith.constant dense<0.000000e+00> : vector<8x32xf32>
      %185 = tpu.matmul %182, %184, %cst_83 {dimension_numbers = #tpu.dot_dimension_numbers<[1], [0], [0], [1], [0, 0, 1, 1], [], []>} : vector<8x32xbf16>, vector<32x32xbf16>, vector<8x32xf32> -> vector<8x32xf32>
      %c5 = arith.constant 5 : index
      %c0_84 = arith.constant 0 : index
      %c0_85 = arith.constant 0 : index
      %186 = vector.load %arg4[%c5, %c0_84, %c0_85] : memref<6x1x32xf32, #tpu.memory_space<vmem>>, vector<1x1x32xf32>
      %187 = vector.shape_cast %186 : vector<1x1x32xf32> to vector<1x32xf32>
      %c5_86 = arith.constant 5 : index
      %c0_87 = arith.constant 0 : index
      %c0_88 = arith.constant 0 : index
      %188 = vector.load %arg5[%c5_86, %c0_87, %c0_88] : memref<6x1x32xf32, #tpu.memory_space<vmem>>, vector<1x1x32xf32>
      %189 = vector.shape_cast %188 : vector<1x1x32xf32> to vector<1x32xf32>
      %190 = vector.broadcast %14 : vector<8x1xf32> to vector<8x32xf32>
      %191 = arith.mulf %185, %190 : vector<8x32xf32>
      %cst_89 = arith.constant dense<0.000000e+00> : vector<32xf32>
      %192 = vector.multi_reduction <add>, %191, %cst_89 [0] : vector<8x32xf32> to vector<32xf32>
      %193 = vector.shape_cast %192 : vector<32xf32> to vector<1x32xf32>
      %194 = arith.mulf %191, %185 : vector<8x32xf32>
      %cst_90 = arith.constant dense<0.000000e+00> : vector<32xf32>
      %195 = vector.multi_reduction <add>, %194, %cst_90 [0] : vector<8x32xf32> to vector<32xf32>
      %196 = vector.shape_cast %195 : vector<32xf32> to vector<1x32xf32>
      %cst_91 = arith.constant 1.250000e-01 : f32
      %197 = vector.broadcast %cst_91 : f32 to vector<1x32xf32>
      %198 = arith.mulf %193, %197 : vector<1x32xf32>
      %cst_92 = arith.constant 1.250000e-01 : f32
      %199 = vector.broadcast %cst_92 : f32 to vector<1x32xf32>
      %200 = arith.mulf %196, %199 : vector<1x32xf32>
      %201 = arith.mulf %198, %198 : vector<1x32xf32>
      %202 = arith.subf %200, %201 : vector<1x32xf32>
      %203 = vector.broadcast %198 : vector<1x32xf32> to vector<8x32xf32>
      %204 = arith.subf %185, %203 : vector<8x32xf32>
      %cst_93 = arith.constant 9.99999974E-6 : f32
      %205 = vector.broadcast %cst_93 : f32 to vector<1x32xf32>
      %206 = arith.addf %202, %205 : vector<1x32xf32>
      %207 = math.rsqrt %206 : vector<1x32xf32>
      %208 = vector.broadcast %207 : vector<1x32xf32> to vector<8x32xf32>
      %209 = arith.mulf %204, %208 : vector<8x32xf32>
      %210 = vector.broadcast %187 : vector<1x32xf32> to vector<8x32xf32>
      %211 = arith.mulf %209, %210 : vector<8x32xf32>
      %212 = vector.broadcast %189 : vector<1x32xf32> to vector<8x32xf32>
      %213 = arith.addf %211, %212 : vector<8x32xf32>
      %cst_94 = arith.constant 0.000000e+00 : f32
      %214 = vector.broadcast %cst_94 : f32 to vector<8x32xf32>
      %215 = arith.maximumf %213, %214 : vector<8x32xf32>
      %216 = arith.truncf %215 : vector<8x32xf32> to vector<8x32xbf16>
      %c0_95 = arith.constant 0 : index
      %c0_96 = arith.constant 0 : index
      %217 = vector.load %arg6[%c0_95, %c0_96] : memref<32x128xbf16, #tpu.memory_space<vmem>>, vector<32x128xbf16>
      %cst_97 = arith.constant dense<0.000000e+00> : vector<8x128xf32>
      %218 = tpu.matmul %216, %217, %cst_97 {dimension_numbers = #tpu.dot_dimension_numbers<[1], [0], [0], [1], [0, 0, 1, 1], [], []>} : vector<8x32xbf16>, vector<32x128xbf16>, vector<8x128xf32> -> vector<8x128xf32>
      %c0_98 = arith.constant 0 : index
      %c0_99 = arith.constant 0 : index
      %219 = vector.load %arg7[%c0_98, %c0_99] : memref<1x128xf32, #tpu.memory_space<vmem>>, vector<1x128xf32>
      %220 = vector.broadcast %219 : vector<1x128xf32> to vector<8x128xf32>
      %221 = arith.addf %218, %220 : vector<8x128xf32>
      %c0_100 = arith.constant 0 : index
      %c0_101 = arith.constant 0 : index
      %222 = vector.load %arg8[%c0_100, %c0_101] : memref<8x128xf32, #tpu.memory_space<vmem>>, vector<8x128xf32>
      tpu.vector_store %arg8[%c0_100, %c0_101], %221 {strides = array<i32>} : memref<8x128xf32, #tpu.memory_space<vmem>>, vector<8x128xf32>,
    } else {
    }
    return
  }
  func.func @transform_0(%arg0: i32) -> (i32, i32) {
    %c0_i32 = arith.constant 0 : i32
    %c0_i32_0 = arith.constant 0 : i32
    return %arg0, %c0_i32 : i32, i32
  }
  func.func @transform_1(%arg0: i32) -> (i32, i32) {
    %c0_i32 = arith.constant 0 : i32
    %c0_i32_0 = arith.constant 0 : i32
    %c0_i32_1 = arith.constant 0 : i32
    return %c0_i32, %c0_i32_0 : i32, i32
  }
  func.func @transform_2(%arg0: i32) -> (i32, i32, i32) {
    %c0_i32 = arith.constant 0 : i32
    %c0_i32_0 = arith.constant 0 : i32
    %c0_i32_1 = arith.constant 0 : i32
    %c0_i32_2 = arith.constant 0 : i32
    return %c0_i32, %c0_i32_0, %c0_i32_1 : i32, i32, i32
  }
  func.func @transform_3(%arg0: i32) -> (i32, i32, i32) {
    %c0_i32 = arith.constant 0 : i32
    %c0_i32_0 = arith.constant 0 : i32
    %c0_i32_1 = arith.constant 0 : i32
    %c0_i32_2 = arith.constant 0 : i32
    return %c0_i32, %c0_i32_0, %c0_i32_1 : i32, i32, i32
  }
  func.func @transform_4(%arg0: i32) -> (i32, i32, i32) {
    %c0_i32 = arith.constant 0 : i32
    %c0_i32_0 = arith.constant 0 : i32
    %c0_i32_1 = arith.constant 0 : i32
    %c0_i32_2 = arith.constant 0 : i32
    return %c0_i32, %c0_i32_0, %c0_i32_1 : i32, i32, i32
  }
  func.func @transform_5(%arg0: i32) -> (i32, i32) {
    %c0_i32 = arith.constant 0 : i32
    %c0_i32_0 = arith.constant 0 : i32
    %c0_i32_1 = arith.constant 0 : i32
    return %c0_i32, %c0_i32_0 : i32, i32
  }
  func.func @transform_6(%arg0: i32) -> (i32, i32) {
    %c0_i32 = arith.constant 0 : i32
    %c0_i32_0 = arith.constant 0 : i32
    %c0_i32_1 = arith.constant 0 : i32
    return %c0_i32, %c0_i32_0 : i32, i32
  }
  func.func @transform_7(%arg0: i32) -> (i32, i32) {
    %c0_i32 = arith.constant 0 : i32
    %c0_i32_0 = arith.constant 0 : i32
    %c0_i32_1 = arith.constant 0 : i32
    return %c0_i32, %c0_i32_0 : i32, i32
  }
}

</mosaic_0001>

<llo_original>
// kernel: tpu_custom_call.1
$region0: #{tpu_custom_call.1}
  #allocation0 [shape = 'u32[]', space=smem, size = 0x4, offset = 0x4, fixed_abs, tag = 'smem constant byte address 0x4 - core index']
  #allocation1 [shape = 'u32[144,128]{1,0:T(1,128)}', space=vmem, size = 0x12000, scoped, tag = 'internal scratch']
  #allocation2 [shape = 'f32[8,32]{1,0:T(8,128)}', space=vmem, size = 0x1000, scoped, tag = 'scratch operand']
  %s0 = inlined_call_operand.vmem [shape: bf16[8,784], index: 0, kind: input, shape index: {}]
  %s1 = inlined_call_operand.vmem [shape: bf16[784,32], index: 1, kind: input, shape index: {}]
  %s2 = inlined_call_operand.vmem [shape: bf16[5,32,32], index: 2, kind: input, shape index: {}]
  %s3 = inlined_call_operand.vmem [shape: f32[6,1,32], index: 3, kind: input, shape index: {}]
  %s4 = inlined_call_operand.vmem [shape: f32[6,1,32], index: 4, kind: input, shape index: {}]
  %s5 = inlined_call_operand.vmem [shape: bf16[32,128], index: 5, kind: input, shape index: {}]
  %s6 = inlined_call_operand.vmem [shape: f32[1,128], index: 6, kind: input, shape index: {}]
  %s7 = inlined_call_operand.hbm [shape: f32[8,128], index: 7, kind: output, shape index: {}]
  %s8 = sld [smem:[#allocation0]]
  $region42: #{tpu_custom_call.1} parent=0
    _
  %s10 = ssub.s32 1, %s8
  %s11 = scalar_select 0, %s10, %s8
  $region1: #{tpu_custom_call.1} parent=0
    #allocation3 [shape = 'u8[4096]{0}', space=vmem, size = 0x1000, scoped, tag = 'output window, operand 0, single buffered']
    #allocation4 [shape = 's32[1]{0}', space=sflag, size = 0x4, scoped, tag = 'scoped memory for tpu_custom_call.1']
    %12 = vsyncpa [#allocation4], 0
    // Predicated region
    $region2: #{tpu_custom_call.1} parent=1 // pred_check
      _
    $region3: #{tpu_custom_call.1} parent=1 // pred_check_branch
      %14 = sbr.rel (0) target = $region5
    $region4: #{tpu_custom_call.1} parent=1 // pred_region
      _
    $region5: #{tpu_custom_call.1} parent=1 // pred_fallthru
      _
    // Predicated region
    $region6: #{tpu_custom_call.1} parent=1 // pred_check
      _
    $region7: #{tpu_custom_call.1} parent=1 // pred_check_branch
      %16 = sbr.rel (0) target = $region9
    $region8: #{tpu_custom_call.1} parent=1 // pred_region
      _
    $region9: #{tpu_custom_call.1} parent=1 // pred_fallthru
      _
    // Predicated region
    $region10: #{tpu_custom_call.1} parent=1 // pred_check
      _
    $region11: #{tpu_custom_call.1} parent=1 // pred_check_branch
      %18 = sbr.rel (0) target = $region13
    $region12: #{tpu_custom_call.1} parent=1 // pred_region
      _
    $region13: #{tpu_custom_call.1} parent=1 // pred_fallthru
      _
    // Predicated region
    $region14: #{tpu_custom_call.1} parent=1 // pred_check
      _
    $region15: #{tpu_custom_call.1} parent=1 // pred_check_branch
      %20 = sbr.rel (0) target = $region17
    $region16: #{tpu_custom_call.1} parent=1 // pred_region
      _
    $region17: #{tpu_custom_call.1} parent=1 // pred_fallthru
      _
    // Predicated region
    $region18: #{tpu_custom_call.1} parent=1 // pred_check
      _
    $region19: #{tpu_custom_call.1} parent=1 // pred_check_branch
      %22 = sbr.rel (0) target = $region21
    $region20: #{tpu_custom_call.1} parent=1 // pred_region
      _
    $region21: #{tpu_custom_call.1} parent=1 // pred_fallthru
      _
    // Predicated region
    $region22: #{tpu_custom_call.1} parent=1 // pred_check
      _
    $region23: #{tpu_custom_call.1} parent=1 // pred_check_branch
      %24 = sbr.rel (0) target = $region25
    $region24: #{tpu_custom_call.1} parent=1 // pred_region
      _
    $region25: #{tpu_custom_call.1} parent=1 // pred_fallthru
      _
    // Predicated region
    $region26: #{tpu_custom_call.1} parent=1 // pred_check
      _
    $region27: #{tpu_custom_call.1} parent=1 // pred_check_branch
      %26 = sbr.rel (0) target = $region29
    $region28: #{tpu_custom_call.1} parent=1 // pred_region
      _
    $region29: #{tpu_custom_call.1} parent=1 // pred_fallthru
      _
    %v28 = vld [vmem:[%s0] sm:$0xff]
    %v29 = vld [vmem:[%s0 + $0x8] sm:$0xff]
    %v30 = vld [vmem:[%s0 + $0x10] sm:$0xff]
    %v31 = vld [vmem:[%s0 + $0x18] sm:$0xf]
    %v32 = vld [vmem:[%s1] sm:$0xf]
    %v33 = vld [vmem:[%s1 + $0x4] sm:$0xf]
    %v34 = vld [vmem:[%s1 + $0x8] sm:$0xf]
    %v35 = vld [vmem:[%s1 + $0xc] sm:$0xf]
    %v36 = vld [vmem:[%s1 + $0x10] sm:$0xf]
    %v37 = vld [vmem:[%s1 + $0x14] sm:$0xf]
    %v38 = vld [vmem:[%s1 + $0x18] sm:$0xf]
    %v39 = vld [vmem:[%s1 + $0x1c] sm:$0xf]
    %v40 = vld [vmem:[%s1 + $0x20] sm:$0xf]
    %v41 = vld [vmem:[%s1 + $0x24] sm:$0xf]
    %v42 = vld [vmem:[%s1 + $0x28] sm:$0xf]
    %v43 = vld [vmem:[%s1 + $0x2c] sm:$0xf]
    %v44 = vld [vmem:[%s1 + $0x30] sm:$0xf]
    %v45 = vld [vmem:[%s1 + $0x34] sm:$0xf]
    %v46 = vld [vmem:[%s1 + $0x38] sm:$0xf]
    %v47 = vld [vmem:[%s1 + $0x3c] sm:$0xf]
    %v48 = vld [vmem:[%s1 + $0x40] sm:$0xf]
    %v49 = vld [vmem:[%s1 + $0x44] sm:$0xf]
    %v50 = vld [vmem:[%s1 + $0x48] sm:$0xf]
    %v51 = vld [vmem:[%s1 + $0x4c] sm:$0xf]
    %v52 = vld [vmem:[%s1 + $0x50] sm:$0xf]
    %v53 = vld [vmem:[%s1 + $0x54] sm:$0xf]
    %v54 = vld [vmem:[%s1 + $0x58] sm:$0xf]
    %v55 = vld [vmem:[%s1 + $0x5c] sm:$0xf]
    %v56 = vld [vmem:[%s1 + $0x60] sm:$0xf]
    %v57 = vld [vmem:[%s1 + $0x64] sm:$0xf]
    %v58 = vld [vmem:[%s1 + $0x68] sm:$0xf]
    %v59 = vld [vmem:[%s1 + $0x6c] sm:$0xf]
    %v60 = vld [vmem:[%s1 + $0x70] sm:$0xf]
    %v61 = vld [vmem:[%s1 + $0x74] sm:$0xf]
    %v62 = vld [vmem:[%s1 + $0x78] sm:$0xf]
    %v63 = vld [vmem:[%s1 + $0x7c] sm:$0xf]
    %v64 = vld [vmem:[%s1 + $0x80] sm:$0xf]
    %v65 = vld [vmem:[%s1 + $0x84] sm:$0xf]
    %v66 = vld [vmem:[%s1 + $0x88] sm:$0xf]
    %v67 = vld [vmem:[%s1 + $0x8c] sm:$0xf]
    %v68 = vld [vmem:[%s1 + $0x90] sm:$0xf]
    %v69 = vld [vmem:[%s1 + $0x94] sm:$0xf]
    %v70 = vld [vmem:[%s1 + $0x98] sm:$0xf]
    %v71 = vld [vmem:[%s1 + $0x9c] sm:$0xf]
    %v72 = vld [vmem:[%s1 + $0xa0] sm:$0xf]
    %v73 = vld [vmem:[%s1 + $0xa4] sm:$0xf]
    %v74 = vld [vmem:[%s1 + $0xa8] sm:$0xf]
    %v75 = vld [vmem:[%s1 + $0xac] sm:$0xf]
    %v76 = vld [vmem:[%s1 + $0xb0] sm:$0xf]
    %v77 = vld [vmem:[%s1 + $0xb4] sm:$0xf]
    %v78 = vld [vmem:[%s1 + $0xb8] sm:$0xf]
    %v79 = vld [vmem:[%s1 + $0xbc] sm:$0xf]
    %v80 = vld [vmem:[%s1 + $0xc0] sm:$0xf]
    %v81 = vld [vmem:[%s1 + $0xc4] sm:$0xf]
    %v82 = vld [vmem:[%s1 + $0xc8] sm:$0xf]
    %v83 = vld [vmem:[%s1 + $0xcc] sm:$0xf]
    %v84 = vld [vmem:[%s1 + $0xd0] sm:$0xf]
    %v85 = vld [vmem:[%s1 + $0xd4] sm:$0xf]
    %v86 = vld [vmem:[%s1 + $0xd8] sm:$0xf]
    %v87 = vld [vmem:[%s1 + $0xdc] sm:$0xf]
    %v88 = vld [vmem:[%s1 + $0xe0] sm:$0xf]
    %v89 = vld [vmem:[%s1 + $0xe4] sm:$0xf]
    %v90 = vld [vmem:[%s1 + $0xe8] sm:$0xf]
    %v91 = vld [vmem:[%s1 + $0xec] sm:$0xf]
    %v92 = vld [vmem:[%s1 + $0xf0] sm:$0xf]
    %v93 = vld [vmem:[%s1 + $0xf4] sm:$0xf]
    %v94 = vld [vmem:[%s1 + $0xf8] sm:$0xf]
    %v95 = vld [vmem:[%s1 + $0xfc] sm:$0xf]
    %v96 = vld [vmem:[%s1 + $0x100] sm:$0xf]
    %v97 = vld [vmem:[%s1 + $0x104] sm:$0xf]
    %v98 = vld [vmem:[%s1 + $0x108] sm:$0xf]
    %v99 = vld [vmem:[%s1 + $0x10c] sm:$0xf]
    %v100 = vld [vmem:[%s1 + $0x110] sm:$0xf]
    %v101 = vld [vmem:[%s1 + $0x114] sm:$0xf]
    %v102 = vld [vmem:[%s1 + $0x118] sm:$0xf]
    %v103 = vld [vmem:[%s1 + $0x11c] sm:$0xf]
    %v104 = vld [vmem:[%s1 + $0x120] sm:$0xf]
    %v105 = vld [vmem:[%s1 + $0x124] sm:$0xf]
    %v106 = vld [vmem:[%s1 + $0x128] sm:$0xf]
    %v107 = vld [vmem:[%s1 + $0x12c] sm:$0xf]
    %v108 = vld [vmem:[%s1 + $0x130] sm:$0xf]
    %v109 = vld [vmem:[%s1 + $0x134] sm:$0xf]
    %v110 = vld [vmem:[%s1 + $0x138] sm:$0xf]
    %v111 = vld [vmem:[%s1 + $0x13c] sm:$0xf]
    %v112 = vld [vmem:[%s1 + $0x140] sm:$0xf]
    %v113 = vld [vmem:[%s1 + $0x144] sm:$0xf]
    %v114 = vld [vmem:[%s1 + $0x148] sm:$0xf]
    %v115 = vld [vmem:[%s1 + $0x14c] sm:$0xf]
    %v116 = vld [vmem:[%s1 + $0x150] sm:$0xf]
    %v117 = vld [vmem:[%s1 + $0x154] sm:$0xf]
    %v118 = vld [vmem:[%s1 + $0x158] sm:$0xf]
    %v119 = vld [vmem:[%s1 + $0x15c] sm:$0xf]
    %v120 = vld [vmem:[%s1 + $0x160] sm:$0xf]
    %v121 = vld [vmem:[%s1 + $0x164] sm:$0xf]
    %v122 = vld [vmem:[%s1 + $0x168] sm:$0xf]
    %v123 = vld [vmem:[%s1 + $0x16c] sm:$0xf]
    %v124 = vld [vmem:[%s1 + $0x170] sm:$0xf]
    %v125 = vld [vmem:[%s1 + $0x174] sm:$0xf]
    %v126 = vld [vmem:[%s1 + $0x178] sm:$0xf]
    %v127 = vld [vmem:[%s1 + $0x17c] sm:$0xf]
    %v128 = vld [vmem:[%s1 + $0x180] sm:$0xf]
    %v129 = vld [vmem:[%s1 + $0x184] sm:$0xf]
    %v134 = vunpack.c.l.b16 %v28
    %v135 = vunpack.c.h.b16 %v28
    %v136 = vunpack.c.l.b16 %v29
    %v137 = vunpack.c.h.b16 %v29
    %v138 = vunpack.c.l.b16 %v30
    %v139 = vunpack.c.h.b16 %v30
    %v140 = vunpack.c.l.b16 %v31
    %v141 = vpack.c.b16 %v134, %v134
    %v142 = vpack.c.b16 %v135, %v135
    %v143 = vpack.c.b16 %v136, %v136
    %v144 = vpack.c.b16 %v137, %v137
    %v145 = vpack.c.b16 %v138, %v138
    %v146 = vpack.c.b16 %v139, %v139
    %v147 = vpack.c.b16 %v140, %v140
    %v252 = vunpack.c.l.b16 %v32
    %v253 = vunpack.c.l.b16 %v33
    %v254 = vunpack.c.l.b16 %v34
    %v255 = vunpack.c.l.b16 %v35
    %v256 = vunpack.c.l.b16 %v36
    %v257 = vunpack.c.l.b16 %v37
    %v258 = vunpack.c.l.b16 %v38
    %v259 = vunpack.c.l.b16 %v39
    %v260 = vunpack.c.l.b16 %v40
    %v261 = vunpack.c.l.b16 %v41
    %v262 = vunpack.c.l.b16 %v42
    %v263 = vunpack.c.l.b16 %v43
    %v264 = vunpack.c.l.b16 %v44
    %v265 = vunpack.c.l.b16 %v45
    %v266 = vunpack.c.l.b16 %v46
    %v267 = vunpack.c.l.b16 %v47
    %v268 = vunpack.c.l.b16 %v48
    %v269 = vunpack.c.l.b16 %v49
    %v270 = vunpack.c.l.b16 %v50
    %v271 = vunpack.c.l.b16 %v51
    %v272 = vunpack.c.l.b16 %v52
    %v273 = vunpack.c.l.b16 %v53
    %v274 = vunpack.c.l.b16 %v54
    %v275 = vunpack.c.l.b16 %v55
    %v276 = vunpack.c.l.b16 %v56
    %v277 = vunpack.c.l.b16 %v57
    %v278 = vunpack.c.l.b16 %v58
    %v279 = vunpack.c.l.b16 %v59
    %v280 = vunpack.c.l.b16 %v60
    %v281 = vunpack.c.l.b16 %v61
    %v282 = vunpack.c.l.b16 %v62
    %v283 = vunpack.c.l.b16 %v63
    %v284 = vunpack.c.l.b16 %v64
    %v285 = vunpack.c.l.b16 %v65
    %v286 = vunpack.c.l.b16 %v66
    %v287 = vunpack.c.l.b16 %v67
    %v288 = vunpack.c.l.b16 %v68
    %v289 = vunpack.c.l.b16 %v69
    %v290 = vunpack.c.l.b16 %v70
    %v291 = vunpack.c.l.b16 %v71
    %v292 = vunpack.c.l.b16 %v72
    %v293 = vunpack.c.l.b16 %v73
    %v294 = vunpack.c.l.b16 %v74
    %v295 = vunpack.c.l.b16 %v75
    %v296 = vunpack.c.l.b16 %v76
    %v297 = vunpack.c.l.b16 %v77
    %v298 = vunpack.c.l.b16 %v78
    %v299 = vunpack.c.l.b16 %v79
    %v300 = vunpack.c.l.b16 %v80
    %v301 = vunpack.c.l.b16 %v81
    %v302 = vunpack.c.l.b16 %v82
    %v303 = vunpack.c.l.b16 %v83
    %v304 = vunpack.c.l.b16 %v84
    %v305 = vunpack.c.l.b16 %v85
    %v306 = vunpack.c.l.b16 %v86
    %v307 = vunpack.c.l.b16 %v87
    %v308 = vunpack.c.l.b16 %v88
    %v309 = vunpack.c.l.b16 %v89
    %v310 = vunpack.c.l.b16 %v90
    %v311 = vunpack.c.l.b16 %v91
    %v312 = vunpack.c.l.b16 %v92
    %v313 = vunpack.c.l.b16 %v93
    %v314 = vunpack.c.l.b16 %v94
    %v315 = vunpack.c.l.b16 %v95
    %v316 = vunpack.c.l.b16 %v96
    %v317 = vunpack.c.l.b16 %v97
    %v318 = vunpack.c.l.b16 %v98
    %v319 = vunpack.c.l.b16 %v99
    %v320 = vunpack.c.l.b16 %v100
    %v321 = vunpack.c.l.b16 %v101
    %v322 = vunpack.c.l.b16 %v102
    %v323 = vunpack.c.l.b16 %v103
    %v324 = vunpack.c.l.b16 %v104
    %v325 = vunpack.c.l.b16 %v105
    %v326 = vunpack.c.l.b16 %v106
    %v327 = vunpack.c.l.b16 %v107
    %v328 = vunpack.c.l.b16 %v108
    %v329 = vunpack.c.l.b16 %v109
    %v330 = vunpack.c.l.b16 %v110
    %v331 = vunpack.c.l.b16 %v111
    %v332 = vunpack.c.l.b16 %v112
    %v333 = vunpack.c.l.b16 %v113
    %v334 = vunpack.c.l.b16 %v114
    %v335 = vunpack.c.l.b16 %v115
    %v336 = vunpack.c.l.b16 %v116
    %v337 = vunpack.c.l.b16 %v117
    %v338 = vunpack.c.l.b16 %v118
    %v339 = vunpack.c.l.b16 %v119
    %v340 = vunpack.c.l.b16 %v120
    %v341 = vunpack.c.l.b16 %v121
    %v342 = vunpack.c.l.b16 %v122
    %v343 = vunpack.c.l.b16 %v123
    %v344 = vunpack.c.l.b16 %v124
    %v345 = vunpack.c.l.b16 %v125
    %v346 = vunpack.c.l.b16 %v126
    %v347 = vunpack.c.l.b16 %v127
    %v348 = vunpack.c.l.b16 %v128
    %v349 = vunpack.c.l.b16 %v129
    %v350 = vpack.c.b16 %v253, %v252
    %v351 = vpack.c.b16 %v255, %v254
    %v352 = vpack.c.b16 %v257, %v256
    %v353 = vpack.c.b16 %v259, %v258
    %v354 = vpack.c.b16 %v261, %v260
    %v355 = vpack.c.b16 %v263, %v262
    %v356 = vpack.c.b16 %v265, %v264
    %v357 = vpack.c.b16 %v267, %v266
    %v358 = vpack.c.b16 %v269, %v268
    %v359 = vpack.c.b16 %v271, %v270
    %v360 = vpack.c.b16 %v273, %v272
    %v361 = vpack.c.b16 %v275, %v274
    %v362 = vpack.c.b16 %v277, %v276
    %v363 = vpack.c.b16 %v279, %v278
    %v364 = vpack.c.b16 %v281, %v280
    %v365 = vpack.c.b16 %v283, %v282
    %v366 = vpack.c.b16 %v285, %v284
    %v367 = vpack.c.b16 %v287, %v286
    %v368 = vpack.c.b16 %v289, %v288
    %v369 = vpack.c.b16 %v291, %v290
    %v370 = vpack.c.b16 %v293, %v292
    %v371 = vpack.c.b16 %v295, %v294
    %v372 = vpack.c.b16 %v297, %v296
    %v373 = vpack.c.b16 %v299, %v298
    %v374 = vpack.c.b16 %v301, %v300
    %v375 = vpack.c.b16 %v303, %v302
    %v376 = vpack.c.b16 %v305, %v304
    %v377 = vpack.c.b16 %v307, %v306
    %v378 = vpack.c.b16 %v309, %v308
    %v379 = vpack.c.b16 %v311, %v310
    %v380 = vpack.c.b16 %v313, %v312
    %v381 = vpack.c.b16 %v315, %v314
    %v382 = vpack.c.b16 %v317, %v316
    %v383 = vpack.c.b16 %v319, %v318
    %v384 = vpack.c.b16 %v321, %v320
    %v385 = vpack.c.b16 %v323, %v322
    %v386 = vpack.c.b16 %v325, %v324
    %v387 = vpack.c.b16 %v327, %v326
    %v388 = vpack.c.b16 %v329, %v328
    %v389 = vpack.c.b16 %v331, %v330
    %v390 = vpack.c.b16 %v333, %v332
    %v391 = vpack.c.b16 %v335, %v334
    %v392 = vpack.c.b16 %v337, %v336
    %v393 = vpack.c.b16 %v339, %v338
    %v394 = vpack.c.b16 %v341, %v340
    %v395 = vpack.c.b16 %v343, %v342
    %v396 = vpack.c.b16 %v345, %v344
    %v397 = vpack.c.b16 %v347, %v346
    %v398 = vpack.c.b16 %v349, %v348
    %vm448 = vcmask 130048
    %v450 = vsel %vm448, %v147, 0
    %452 = vmatprep.subr.bf16.mxu0 0
    %453 = vmatpush1.bf16.msra.mxu0 %v357
    %454 = vmatprep.subr.bf16.mxu0 0
    %455 = vmatpush1.bf16.msra.mxu0 %v356
    %456 = vmatprep.subr.bf16.mxu0 0
    %457 = vmatpush1.bf16.msra.mxu0 %v355
    %458 = vmatprep.subr.bf16.mxu0 0
    %459 = vmatpush1.bf16.msra.mxu0 %v354
    %460 = vmatprep.subr.bf16.mxu0 0
    %461 = vmatpush1.bf16.msra.mxu0 %v353
    %462 = vmatprep.subr.bf16.mxu0 0
    %463 = vmatpush1.bf16.msra.mxu0 %v352
    %464 = vmatprep.subr.bf16.mxu0 0
    %465 = vmatpush1.bf16.msra.mxu0 %v351
    %466 = vmatprep.subr.bf16.mxu0 0
    %467 = vmatpush1.bf16.msra.mxu0 %v350
    %468 = vmatprep.subr.bf16.mxu0 0
    %469 = vmatpush2.bf16.msra.mxu0 %v365
    %470 = vmatprep.subr.bf16.mxu0 0
    %471 = vmatpush2.bf16.msra.mxu0 %v364
    %472 = vmatprep.subr.bf16.mxu0 0
    %473 = vmatpush2.bf16.msra.mxu0 %v363
    %474 = vmatprep.subr.bf16.mxu0 0
    %475 = vmatpush2.bf16.msra.mxu0 %v362
    %476 = vmatprep.subr.bf16.mxu0 0
    %477 = vmatpush2.bf16.msra.mxu0 %v361
    %478 = vmatprep.subr.bf16.mxu0 0
    %479 = vmatpush2.bf16.msra.mxu0 %v360
    %480 = vmatprep.subr.bf16.mxu0 0
    %481 = vmatpush2.bf16.msra.mxu0 %v359
    %482 = vmatprep.subr.bf16.mxu0 0
    %483 = vmatpush2.bf16.msra.mxu0 %v358
    %484 = vmatprep.mubr.bf16.mxu0 %v142
    %485 = vmatmul.mubr.bf16.gmra.mxu0 %v141
    %v486 = vpop.f32.mrf.mxu0
    %v487 = vadd.f32 0.0, %v486
    %v488 = vpop.f32.mrf.mxu0
    %v489 = vpop.f32.mrf.mxu0
    %v490 = vpop.f32.mrf.mxu0
    %491 = vdwg.mxu0
    %492 = vmatprep.subr.bf16.mxu0 0
    %493 = vmatpush1.bf16.msra.mxu0 %v373
    %494 = vmatprep.subr.bf16.mxu0 0
    %495 = vmatpush1.bf16.msra.mxu0 %v372
    %496 = vmatprep.subr.bf16.mxu0 0
    %497 = vmatpush1.bf16.msra.mxu0 %v371
    %498 = vmatprep.subr.bf16.mxu0 0
    %499 = vmatpush1.bf16.msra.mxu0 %v370
    %500 = vmatprep.subr.bf16.mxu0 0
    %501 = vmatpush1.bf16.msra.mxu0 %v369
    %502 = vmatprep.subr.bf16.mxu0 0
    %503 = vmatpush1.bf16.msra.mxu0 %v368
    %504 = vmatprep.subr.bf16.mxu0 0
    %505 = vmatpush1.bf16.msra.mxu0 %v367
    %506 = vmatprep.subr.bf16.mxu0 0
    %507 = vmatpush1.bf16.msra.mxu0 %v366
    %508 = vmatprep.subr.bf16.mxu0 0
    %509 = vmatpush2.bf16.msra.mxu0 %v381
    %510 = vmatprep.subr.bf16.mxu0 0
    %511 = vmatpush2.bf16.msra.mxu0 %v380
    %512 = vmatprep.subr.bf16.mxu0 0
    %513 = vmatpush2.bf16.msra.mxu0 %v379
    %514 = vmatprep.subr.bf16.mxu0 0
    %515 = vmatpush2.bf16.msra.mxu0 %v378
    %516 = vmatprep.subr.bf16.mxu0 0
    %517 = vmatpush2.bf16.msra.mxu0 %v377
    %518 = vmatprep.subr.bf16.mxu0 0
    %519 = vmatpush2.bf16.msra.mxu0 %v376
    %520 = vmatprep.subr.bf16.mxu0 0
    %521 = vmatpush2.bf16.msra.mxu0 %v375
    %522 = vmatprep.subr.bf16.mxu0 0
    %523 = vmatpush2.bf16.msra.mxu0 %v374
    %524 = vmatprep.mubr.bf16.mxu0 %v144
    %525 = vmatmul.mubr.bf16.gmra.mxu0 %v143
    %v526 = vpop.f32.mrf.mxu0
    %v527 = vadd.f32 %v487, %v526
    %v528 = vpop.f32.mrf.mxu0
    %v529 = vpop.f32.mrf.mxu0
    %v530 = vpop.f32.mrf.mxu0
    %531 = vdwg.mxu0
    %532 = vmatprep.subr.bf16.mxu0 0
    %533 = vmatpush1.bf16.msra.mxu0 %v389
    %534 = vmatprep.subr.bf16.mxu0 0
    %535 = vmatpush1.bf16.msra.mxu0 %v388
    %536 = vmatprep.subr.bf16.mxu0 0
    %537 = vmatpush1.bf16.msra.mxu0 %v387
    %538 = vmatprep.subr.bf16.mxu0 0
    %539 = vmatpush1.bf16.msra.mxu0 %v386
    %540 = vmatprep.subr.bf16.mxu0 0
    %541 = vmatpush1.bf16.msra.mxu0 %v385
    %542 = vmatprep.subr.bf16.mxu0 0
    %543 = vmatpush1.bf16.msra.mxu0 %v384
    %544 = vmatprep.subr.bf16.mxu0 0
    %545 = vmatpush1.bf16.msra.mxu0 %v383
    %546 = vmatprep.subr.bf16.mxu0 0
    %547 = vmatpush1.bf16.msra.mxu0 %v382
    %548 = vmatprep.subr.bf16.mxu0 0
    %549 = vmatpush2.bf16.msra.mxu0 %v397
    %550 = vmatprep.subr.bf16.mxu0 0
    %551 = vmatpush2.bf16.msra.mxu0 %v396
    %552 = vmatprep.subr.bf16.mxu0 0
    %553 = vmatpush2.bf16.msra.mxu0 %v395
    %554 = vmatprep.subr.bf16.mxu0 0
    %555 = vmatpush2.bf16.msra.mxu0 %v394
    %556 = vmatprep.subr.bf16.mxu0 0
    %557 = vmatpush2.bf16.msra.mxu0 %v393
    %558 = vmatprep.subr.bf16.mxu0 0
    %559 = vmatpush2.bf16.msra.mxu0 %v392
    %560 = vmatprep.subr.bf16.mxu0 0
    %561 = vmatpush2.bf16.msra.mxu0 %v391
    %562 = vmatprep.subr.bf16.mxu0 0
    %563 = vmatpush2.bf16.msra.mxu0 %v390
    %564 = vmatprep.mubr.bf16.mxu0 %v146
    %565 = vmatmul.mubr.bf16.gmra.mxu0 %v145
    %v566 = vpop.f32.mrf.mxu0
    %v567 = vadd.f32 %v527, %v566
    %v568 = vpop.f32.mrf.mxu0
    %v569 = vpop.f32.mrf.mxu0
    %v570 = vpop.f32.mrf.mxu0
    %571 = vdwg.mxu0
    %572 = vmatprep.subr.bf16.mxu0 0
    %573 = vmatpush1.bf16.msra.mxu0 0
    %574 = vmatprep.subr.bf16.mxu0 0
    %575 = vmatpush1.bf16.msra.mxu0 0
    %576 = vmatprep.subr.bf16.mxu0 0
    %577 = vmatpush1.bf16.msra.mxu0 0
    %578 = vmatprep.subr.bf16.mxu0 0
    %579 = vmatpush1.bf16.msra.mxu0 0
    %580 = vmatprep.subr.bf16.mxu0 0
    %581 = vmatpush1.bf16.msra.mxu0 0
    %582 = vmatprep.subr.bf16.mxu0 0
    %583 = vmatpush1.bf16.msra.mxu0 0
    %584 = vmatprep.subr.bf16.mxu0 0
    %585 = vmatpush1.bf16.msra.mxu0 0
    %586 = vmatprep.subr.bf16.mxu0 0
    %587 = vmatpush1.bf16.msra.mxu0 %v398
    %588 = vmatprep.subr.bf16.mxu0 0
    %589 = vmatpush2.bf16.msra.mxu0 0
    %590 = vmatprep.subr.bf16.mxu0 0
    %591 = vmatpush2.bf16.msra.mxu0 0
    %592 = vmatprep.subr.bf16.mxu0 0
    %593 = vmatpush2.bf16.msra.mxu0 0
    %594 = vmatprep.subr.bf16.mxu0 0
    %595 = vmatpush2.bf16.msra.mxu0 0
    %596 = vmatprep.subr.bf16.mxu0 0
    %597 = vmatpush2.bf16.msra.mxu0 0
    %598 = vmatprep.subr.bf16.mxu0 0
    %599 = vmatpush2.bf16.msra.mxu0 0
    %600 = vmatprep.subr.bf16.mxu0 0
    %601 = vmatpush2.bf16.msra.mxu0 0
    %602 = vmatprep.subr.bf16.mxu0 0
    %603 = vmatpush2.bf16.msra.mxu0 0
    %604 = vmatprep.mubr.bf16.mxu0 0
    %605 = vmatmul.mubr.bf16.gmra.mxu0 %v450
    %v606 = vpop.f32.mrf.mxu0
    %v607 = vadd.f32 %v567, %v606
    %v608 = vpop.f32.mrf.mxu0
    %v609 = vpop.f32.mrf.mxu0
    %v610 = vpop.f32.mrf.mxu0
    %611 = vdwg.mxu0
    %s612 = smul.u32 0, 8
    %s613 = scalar_lea.vmem [#allocation2], %s612
    %vm614 = vcmask 261120
    %615 = vst.msk [vmem:[%s613] sm:$0xff] %vm614, %v607
    %p616 = scmp.eq.s32.totalorder 0, 0
    // Predicated region
    $region30: #{tpu_custom_call.1} parent=1 // pred_check
      %p617 = pneg %p616
    $region31: #{tpu_custom_call.1} parent=1 // pred_check_branch
      %619 = sbr.rel (%p617) target = $region33
    $region32: #{tpu_custom_call.1} parent=1 // pred_region
      %v620 = vlaneseq
      %v621 = vshrl.u32 %v620, 7
      %vm622 = vcmp.lt.s32.totalorder %v621, 8
      %v623 = vsel %vm622, 1, 0
      %v624 = vcvt.s32.f32 %v623
      %v625 = vld [vmem:[#allocation2] sm:$0xff]
      %v626 = vld [vmem:[%s3] sm:$0x1]
      %v627 = vld [vmem:[%s4] sm:$0x1]
      %v628 = vmul.f32 %v625, %v624
      %v629 = vsel %vm614, %v628, 0.0
      %v630 = vrot.slane %v629, 4
      %v631 = vadd.f32 %v629, %v630
      %v632 = vrot.slane %v631, 2
      %v633 = vadd.f32 %v631, %v632
      %v634 = vrot.slane %v633, 1
      %v635 = vadd.f32 %v633, %v634
      %v636 = vmul.f32 %v628, %v625
      %v637 = vsel %vm614, %v636, 0.0
      %v638 = vrot.slane %v637, 4
      %v639 = vadd.f32 %v637, %v638
      %v640 = vrot.slane %v639, 2
      %v641 = vadd.f32 %v639, %v640
      %v642 = vrot.slane %v641, 1
      %v643 = vadd.f32 %v641, %v642
      %v644 = vmul.f32 %v635, 0.125
      %v645 = vmul.f32 %v643, 0.125
      %v646 = vmul.f32 %v644, %v644
      %v647 = vsub.f32 %v645, %v646
      %v648 = vsub.f32 %v625, %v644
      %v649 = vadd.f32 %v647, 1e-05
      %v650 = vrsqrt.pop %v649
      %v651 = vmul.f32 %v648, %v650
      %v653 = vlaneseq
      %v654 = vshrl.u32 %v653, 7
      %v655 = vsub.s32 0, %v654
      %v656 = vrot.slane %v626, %v655
      %v658 = vmul.f32 %v651, %v656
      %v660 = vlaneseq
      %v661 = vshrl.u32 %v660, 7
      %v662 = vsub.s32 0, %v661
      %v663 = vrot.slane %v627, %v662
      %v665 = vadd.f32 %v658, %v663
      %v666 = vmax.f32 %v665, 0.0
      %v667 = vpack.c.bf16 %v666, %v666
      %v668 = vld [vmem:[%s2] sm:$0xf]
      %v669 = vld [vmem:[%s2 + $0x4] sm:$0xf]
      %v670 = vld [vmem:[%s2 + $0x8] sm:$0xf]
      %v671 = vld [vmem:[%s2 + $0xc] sm:$0xf]
      %v676 = vunpack.c.l.b16 %v668
      %v677 = vunpack.c.l.b16 %v669
      %v678 = vunpack.c.l.b16 %v670
      %v679 = vunpack.c.l.b16 %v671
      %v680 = vpack.c.b16 %v677, %v676
      %v681 = vpack.c.b16 %v679, %v678
      %v685 = vsel %vm614, %v667, 0
      %687 = vmatprep.subr.bf16.mxu0 0
      %688 = vmatpush1.bf16.msra.mxu0 0
      %689 = vmatprep.subr.bf16.mxu0 0
      %690 = vmatpush1.bf16.msra.mxu0 0
      %691 = vmatprep.subr.bf16.mxu0 0
      %692 = vmatpush1.bf16.msra.mxu0 0
      %693 = vmatprep.subr.bf16.mxu0 0
      %694 = vmatpush1.bf16.msra.mxu0 0
      %695 = vmatprep.subr.bf16.mxu0 0
      %696 = vmatpush1.bf16.msra.mxu0 0
      %697 = vmatprep.subr.bf16.mxu0 0
      %698 = vmatpush1.bf16.msra.mxu0 0
      %699 = vmatprep.subr.bf16.mxu0 0
      %700 = vmatpush1.bf16.msra.mxu0 %v681
      %701 = vmatprep.subr.bf16.mxu0 0
      %702 = vmatpush1.bf16.msra.mxu0 %v680
      %703 = vmatprep.subr.bf16.mxu0 0
      %704 = vmatpush2.bf16.msra.mxu0 0
      %705 = vmatprep.subr.bf16.mxu0 0
      %706 = vmatpush2.bf16.msra.mxu0 0
      %707 = vmatprep.subr.bf16.mxu0 0
      %708 = vmatpush2.bf16.msra.mxu0 0
      %709 = vmatprep.subr.bf16.mxu0 0
      %710 = vmatpush2.bf16.msra.mxu0 0
      %711 = vmatprep.subr.bf16.mxu0 0
      %712 = vmatpush2.bf16.msra.mxu0 0
      %713 = vmatprep.subr.bf16.mxu0 0
      %714 = vmatpush2.bf16.msra.mxu0 0
      %715 = vmatprep.subr.bf16.mxu0 0
      %716 = vmatpush2.bf16.msra.mxu0 0
      %717 = vmatprep.subr.bf16.mxu0 0
      %718 = vmatpush2.bf16.msra.mxu0 0
      %719 = vmatprep.mubr.bf16.mxu0 0
      %720 = vmatmul.mubr.bf16.gmra.mxu0 %v685
      %v721 = vpop.f32.mrf.mxu0
      %v722 = vadd.f32 0.0, %v721
      %v723 = vpop.f32.mrf.mxu0
      %v724 = vpop.f32.mrf.mxu0
      %v725 = vpop.f32.mrf.mxu0
      %726 = vdwg.mxu0
      %s727 = scalar_lea.vmem %s3, 1
      %v728 = vld [vmem:[%s727] sm:$0x1]
      %s729 = scalar_lea.vmem %s4, 1
      %v730 = vld [vmem:[%s729] sm:$0x1]
      %v731 = vmul.f32 %v722, %v624
      %v732 = vsel %vm614, %v731, 0.0
      %v733 = vrot.slane %v732, 4
      %v734 = vadd.f32 %v732, %v733
      %v735 = vrot.slane %v734, 2
      %v736 = vadd.f32 %v734, %v735
      %v737 = vrot.slane %v736, 1
      %v738 = vadd.f32 %v736, %v737
      %v739 = vmul.f32 %v731, %v722
      %v740 = vsel %vm614, %v739, 0.0
      %v741 = vrot.slane %v740, 4
      %v742 = vadd.f32 %v740, %v741
      %v743 = vrot.slane %v742, 2
      %v744 = vadd.f32 %v742, %v743
      %v745 = vrot.slane %v744, 1
      %v746 = vadd.f32 %v744, %v745
      %v747 = vmul.f32 %v738, 0.125
      %v748 = vmul.f32 %v746, 0.125
      %v749 = vmul.f32 %v747, %v747
      %v750 = vsub.f32 %v748, %v749
      %v751 = vsub.f32 %v722, %v747
      %v752 = vadd.f32 %v750, 1e-05
      %v753 = vrsqrt.pop %v752
      %v754 = vmul.f32 %v751, %v753
      %v756 = vlaneseq
      %v757 = vshrl.u32 %v756, 7
      %v758 = vsub.s32 0, %v757
      %v759 = vrot.slane %v728, %v758
      %v761 = vmul.f32 %v754, %v759
      %v763 = vlaneseq
      %v764 = vshrl.u32 %v763, 7
      %v765 = vsub.s32 0, %v764
      %v766 = vrot.slane %v730, %v765
      %v768 = vadd.f32 %v761, %v766
      %v769 = vmax.f32 %v768, 0.0
      %v770 = vpack.c.bf16 %v769, %v769
      %s771 = scalar_lea.vmem %s2, 16
      %v772 = vld [vmem:[%s771] sm:$0xf]
      %v773 = vld [vmem:[%s771 + $0x4] sm:$0xf]
      %v774 = vld [vmem:[%s771 + $0x8] sm:$0xf]
      %v775 = vld [vmem:[%s771 + $0xc] sm:$0xf]
      %v780 = vunpack.c.l.b16 %v772
      %v781 = vunpack.c.l.b16 %v773
      %v782 = vunpack.c.l.b16 %v774
      %v783 = vunpack.c.l.b16 %v775
      %v784 = vpack.c.b16 %v781, %v780
      %v785 = vpack.c.b16 %v783, %v782
      %v789 = vsel %vm614, %v770, 0
      %791 = vmatprep.subr.bf16.mxu0 0
      %792 = vmatpush1.bf16.msra.mxu0 0
      %793 = vmatprep.subr.bf16.mxu0 0
      %794 = vmatpush1.bf16.msra.mxu0 0
      %795 = vmatprep.subr.bf16.mxu0 0
      %796 = vmatpush1.bf16.msra.mxu0 0
      %797 = vmatprep.subr.bf16.mxu0 0
      %798 = vmatpush1.bf16.msra.mxu0 0
      %799 = vmatprep.subr.bf16.mxu0 0
      %800 = vmatpush1.bf16.msra.mxu0 0
      %801 = vmatprep.subr.bf16.mxu0 0
      %802 = vmatpush1.bf16.msra.mxu0 0
      %803 = vmatprep.subr.bf16.mxu0 0
      %804 = vmatpush1.bf16.msra.mxu0 %v785
      %805 = vmatprep.subr.bf16.mxu0 0
      %806 = vmatpush1.bf16.msra.mxu0 %v784
      %807 = vmatprep.subr.bf16.mxu0 0
      %808 = vmatpush2.bf16.msra.mxu0 0
      %809 = vmatprep.subr.bf16.mxu0 0
      %810 = vmatpush2.bf16.msra.mxu0 0
      %811 = vmatprep.subr.bf16.mxu0 0
      %812 = vmatpush2.bf16.msra.mxu0 0
      %813 = vmatprep.subr.bf16.mxu0 0
      %814 = vmatpush2.bf16.msra.mxu0 0
      %815 = vmatprep.subr.bf16.mxu0 0
      %816 = vmatpush2.bf16.msra.mxu0 0
      %817 = vmatprep.subr.bf16.mxu0 0
      %818 = vmatpush2.bf16.msra.mxu0 0
      %819 = vmatprep.subr.bf16.mxu0 0
      %820 = vmatpush2.bf16.msra.mxu0 0
      %821 = vmatprep.subr.bf16.mxu0 0
      %822 = vmatpush2.bf16.msra.mxu0 0
      %823 = vmatprep.mubr.bf16.mxu0 0
      %824 = vmatmul.mubr.bf16.gmra.mxu0 %v789
      %v825 = vpop.f32.mrf.mxu0
      %v826 = vadd.f32 0.0, %v825
      %v827 = vpop.f32.mrf.mxu0
      %v828 = vpop.f32.mrf.mxu0
      %v829 = vpop.f32.mrf.mxu0
      %830 = vdwg.mxu0
      %s831 = scalar_lea.vmem %s3, 2
      %v832 = vld [vmem:[%s831] sm:$0x1]
      %s833 = scalar_lea.vmem %s4, 2
      %v834 = vld [vmem:[%s833] sm:$0x1]
      %v835 = vmul.f32 %v826, %v624
      %v836 = vsel %vm614, %v835, 0.0
      %v837 = vrot.slane %v836, 4
      %v838 = vadd.f32 %v836, %v837
      %v839 = vrot.slane %v838, 2
      %v840 = vadd.f32 %v838, %v839
      %v841 = vrot.slane %v840, 1
      %v842 = vadd.f32 %v840, %v841
      %v843 = vmul.f32 %v835, %v826
      %v844 = vsel %vm614, %v843, 0.0
      %v845 = vrot.slane %v844, 4
      %v846 = vadd.f32 %v844, %v845
      %v847 = vrot.slane %v846, 2
      %v848 = vadd.f32 %v846, %v847
      %v849 = vrot.slane %v848, 1
      %v850 = vadd.f32 %v848, %v849
      %v851 = vmul.f32 %v842, 0.125
      %v852 = vmul.f32 %v850, 0.125
      %v853 = vmul.f32 %v851, %v851
      %v854 = vsub.f32 %v852, %v853
      %v855 = vsub.f32 %v826, %v851
      %v856 = vadd.f32 %v854, 1e-05
      %v857 = vrsqrt.pop %v856
      %v858 = vmul.f32 %v855, %v857
      %v860 = vlaneseq
      %v861 = vshrl.u32 %v860, 7
      %v862 = vsub.s32 0, %v861
      %v863 = vrot.slane %v832, %v862
      %v865 = vmul.f32 %v858, %v863
      %v867 = vlaneseq
      %v868 = vshrl.u32 %v867, 7
      %v869 = vsub.s32 0, %v868
      %v870 = vrot.slane %v834, %v869
      %v872 = vadd.f32 %v865, %v870
      %v873 = vmax.f32 %v872, 0.0
      %v874 = vpack.c.bf16 %v873, %v873
      %s875 = scalar_lea.vmem %s2, 32
      %v876 = vld [vmem:[%s875] sm:$0xf]
      %v877 = vld [vmem:[%s875 + $0x4] sm:$0xf]
      %v878 = vld [vmem:[%s875 + $0x8] sm:$0xf]
      %v879 = vld [vmem:[%s875 + $0xc] sm:$0xf]
      %v884 = vunpack.c.l.b16 %v876
      %v885 = vunpack.c.l.b16 %v877
      %v886 = vunpack.c.l.b16 %v878
      %v887 = vunpack.c.l.b16 %v879
      %v888 = vpack.c.b16 %v885, %v884
      %v889 = vpack.c.b16 %v887, %v886
      %v893 = vsel %vm614, %v874, 0
      %895 = vmatprep.subr.bf16.mxu0 0
      %896 = vmatpush1.bf16.msra.mxu0 0
      %897 = vmatprep.subr.bf16.mxu0 0
      %898 = vmatpush1.bf16.msra.mxu0 0
      %899 = vmatprep.subr.bf16.mxu0 0
      %900 = vmatpush1.bf16.msra.mxu0 0
      %901 = vmatprep.subr.bf16.mxu0 0
      %902 = vmatpush1.bf16.msra.mxu0 0
      %903 = vmatprep.subr.bf16.mxu0 0
      %904 = vmatpush1.bf16.msra.mxu0 0
      %905 = vmatprep.subr.bf16.mxu0 0
      %906 = vmatpush1.bf16.msra.mxu0 0
      %907 = vmatprep.subr.bf16.mxu0 0
      %908 = vmatpush1.bf16.msra.mxu0 %v889
      %909 = vmatprep.subr.bf16.mxu0 0
      %910 = vmatpush1.bf16.msra.mxu0 %v888
      %911 = vmatprep.subr.bf16.mxu0 0
      %912 = vmatpush2.bf16.msra.mxu0 0
      %913 = vmatprep.subr.bf16.mxu0 0
      %914 = vmatpush2.bf16.msra.mxu0 0
      %915 = vmatprep.subr.bf16.mxu0 0
      %916 = vmatpush2.bf16.msra.mxu0 0
      %917 = vmatprep.subr.bf16.mxu0 0
      %918 = vmatpush2.bf16.msra.mxu0 0
      %919 = vmatprep.subr.bf16.mxu0 0
      %920 = vmatpush2.bf16.msra.mxu0 0
      %921 = vmatprep.subr.bf16.mxu0 0
      %922 = vmatpush2.bf16.msra.mxu0 0
      %923 = vmatprep.subr.bf16.mxu0 0
      %924 = vmatpush2.bf16.msra.mxu0 0
      %925 = vmatprep.subr.bf16.mxu0 0
      %926 = vmatpush2.bf16.msra.mxu0 0
      %927 = vmatprep.mubr.bf16.mxu0 0
      %928 = vmatmul.mubr.bf16.gmra.mxu0 %v893
      %v929 = vpop.f32.mrf.mxu0
      %v930 = vadd.f32 0.0, %v929
      %v931 = vpop.f32.mrf.mxu0
      %v932 = vpop.f32.mrf.mxu0
      %v933 = vpop.f32.mrf.mxu0
      %934 = vdwg.mxu0
      %s935 = scalar_lea.vmem %s3, 3
      %v936 = vld [vmem:[%s935] sm:$0x1]
      %s937 = scalar_lea.vmem %s4, 3
      %v938 = vld [vmem:[%s937] sm:$0x1]
      %v939 = vmul.f32 %v930, %v624
      %v940 = vsel %vm614, %v939, 0.0
      %v941 = vrot.slane %v940, 4
      %v942 = vadd.f32 %v940, %v941
      %v943 = vrot.slane %v942, 2
      %v944 = vadd.f32 %v942, %v943
      %v945 = vrot.slane %v944, 1
      %v946 = vadd.f32 %v944, %v945
      %v947 = vmul.f32 %v939, %v930
      %v948 = vsel %vm614, %v947, 0.0
      %v949 = vrot.slane %v948, 4
      %v950 = vadd.f32 %v948, %v949
      %v951 = vrot.slane %v950, 2
      %v952 = vadd.f32 %v950, %v951
      %v953 = vrot.slane %v952, 1
      %v954 = vadd.f32 %v952, %v953
      %v955 = vmul.f32 %v946, 0.125
      %v956 = vmul.f32 %v954, 0.125
      %v957 = vmul.f32 %v955, %v955
      %v958 = vsub.f32 %v956, %v957
      %v959 = vsub.f32 %v930, %v955
      %v960 = vadd.f32 %v958, 1e-05
      %v961 = vrsqrt.pop %v960
      %v962 = vmul.f32 %v959, %v961
      %v964 = vlaneseq
      %v965 = vshrl.u32 %v964, 7
      %v966 = vsub.s32 0, %v965
      %v967 = vrot.slane %v936, %v966
      %v969 = vmul.f32 %v962, %v967
      %v971 = vlaneseq
      %v972 = vshrl.u32 %v971, 7
      %v973 = vsub.s32 0, %v972
      %v974 = vrot.slane %v938, %v973
      %v976 = vadd.f32 %v969, %v974
      %v977 = vmax.f32 %v976, 0.0
      %v978 = vpack.c.bf16 %v977, %v977
      %s979 = scalar_lea.vmem %s2, 48
      %v980 = vld [vmem:[%s979] sm:$0xf]
      %v981 = vld [vmem:[%s979 + $0x4] sm:$0xf]
      %v982 = vld [vmem:[%s979 + $0x8] sm:$0xf]
      %v983 = vld [vmem:[%s979 + $0xc] sm:$0xf]
      %v988 = vunpack.c.l.b16 %v980
      %v989 = vunpack.c.l.b16 %v981
      %v990 = vunpack.c.l.b16 %v982
      %v991 = vunpack.c.l.b16 %v983
      %v992 = vpack.c.b16 %v989, %v988
      %v993 = vpack.c.b16 %v991, %v990
      %v997 = vsel %vm614, %v978, 0
      %999 = vmatprep.subr.bf16.mxu0 0
      %1000 = vmatpush1.bf16.msra.mxu0 0
      %1001 = vmatprep.subr.bf16.mxu0 0
      %1002 = vmatpush1.bf16.msra.mxu0 0
      %1003 = vmatprep.subr.bf16.mxu0 0
      %1004 = vmatpush1.bf16.msra.mxu0 0
      %1005 = vmatprep.subr.bf16.mxu0 0
      %1006 = vmatpush1.bf16.msra.mxu0 0
      %1007 = vmatprep.subr.bf16.mxu0 0
      %1008 = vmatpush1.bf16.msra.mxu0 0
      %1009 = vmatprep.subr.bf16.mxu0 0
      %1010 = vmatpush1.bf16.msra.mxu0 0
      %1011 = vmatprep.subr.bf16.mxu0 0
      %1012 = vmatpush1.bf16.msra.mxu0 %v993
      %1013 = vmatprep.subr.bf16.mxu0 0
      %1014 = vmatpush1.bf16.msra.mxu0 %v992
      %1015 = vmatprep.subr.bf16.mxu0 0
      %1016 = vmatpush2.bf16.msra.mxu0 0
      %1017 = vmatprep.subr.bf16.mxu0 0
      %1018 = vmatpush2.bf16.msra.mxu0 0
      %1019 = vmatprep.subr.bf16.mxu0 0
      %1020 = vmatpush2.bf16.msra.mxu0 0
      %1021 = vmatprep.subr.bf16.mxu0 0
      %1022 = vmatpush2.bf16.msra.mxu0 0
      %1023 = vmatprep.subr.bf16.mxu0 0
      %1024 = vmatpush2.bf16.msra.mxu0 0
      %1025 = vmatprep.subr.bf16.mxu0 0
      %1026 = vmatpush2.bf16.msra.mxu0 0
      %1027 = vmatprep.subr.bf16.mxu0 0
      %1028 = vmatpush2.bf16.msra.mxu0 0
      %1029 = vmatprep.subr.bf16.mxu0 0
      %1030 = vmatpush2.bf16.msra.mxu0 0
      %1031 = vmatprep.mubr.bf16.mxu0 0
      %1032 = vmatmul.mubr.bf16.gmra.mxu0 %v997
      %v1033 = vpop.f32.mrf.mxu0
      %v1034 = vadd.f32 0.0, %v1033
      %v1035 = vpop.f32.mrf.mxu0
      %v1036 = vpop.f32.mrf.mxu0
      %v1037 = vpop.f32.mrf.mxu0
      %1038 = vdwg.mxu0
      %s1039 = scalar_lea.vmem %s3, 4
      %v1040 = vld [vmem:[%s1039] sm:$0x1]
      %s1041 = scalar_lea.vmem %s4, 4
      %v1042 = vld [vmem:[%s1041] sm:$0x1]
      %v1043 = vmul.f32 %v1034, %v624
      %v1044 = vsel %vm614, %v1043, 0.0
      %v1045 = vrot.slane %v1044, 4
      %v1046 = vadd.f32 %v1044, %v1045
      %v1047 = vrot.slane %v1046, 2
      %v1048 = vadd.f32 %v1046, %v1047
      %v1049 = vrot.slane %v1048, 1
      %v1050 = vadd.f32 %v1048, %v1049
      %v1051 = vmul.f32 %v1043, %v1034
      %v1052 = vsel %vm614, %v1051, 0.0
      %v1053 = vrot.slane %v1052, 4
      %v1054 = vadd.f32 %v1052, %v1053
      %v1055 = vrot.slane %v1054, 2
      %v1056 = vadd.f32 %v1054, %v1055
      %v1057 = vrot.slane %v1056, 1
      %v1058 = vadd.f32 %v1056, %v1057
      %v1059 = vmul.f32 %v1050, 0.125
      %v1060 = vmul.f32 %v1058, 0.125
      %v1061 = vmul.f32 %v1059, %v1059
      %v1062 = vsub.f32 %v1060, %v1061
      %v1063 = vsub.f32 %v1034, %v1059
      %v1064 = vadd.f32 %v1062, 1e-05
      %v1065 = vrsqrt.pop %v1064
      %v1066 = vmul.f32 %v1063, %v1065
      %v1068 = vlaneseq
      %v1069 = vshrl.u32 %v1068, 7
      %v1070 = vsub.s32 0, %v1069
      %v1071 = vrot.slane %v1040, %v1070
      %v1073 = vmul.f32 %v1066, %v1071
      %v1075 = vlaneseq
      %v1076 = vshrl.u32 %v1075, 7
      %v1077 = vsub.s32 0, %v1076
      %v1078 = vrot.slane %v1042, %v1077
      %v1080 = vadd.f32 %v1073, %v1078
      %v1081 = vmax.f32 %v1080, 0.0
      %v1082 = vpack.c.bf16 %v1081, %v1081
      %s1083 = scalar_lea.vmem %s2, 64
      %v1084 = vld [vmem:[%s1083] sm:$0xf]
      %v1085 = vld [vmem:[%s1083 + $0x4] sm:$0xf]
      %v1086 = vld [vmem:[%s1083 + $0x8] sm:$0xf]
      %v1087 = vld [vmem:[%s1083 + $0xc] sm:$0xf]
      %v1092 = vunpack.c.l.b16 %v1084
      %v1093 = vunpack.c.l.b16 %v1085
      %v1094 = vunpack.c.l.b16 %v1086
      %v1095 = vunpack.c.l.b16 %v1087
      %v1096 = vpack.c.b16 %v1093, %v1092
      %v1097 = vpack.c.b16 %v1095, %v1094
      %v1101 = vsel %vm614, %v1082, 0
      %1103 = vmatprep.subr.bf16.mxu0 0
      %1104 = vmatpush1.bf16.msra.mxu0 0
      %1105 = vmatprep.subr.bf16.mxu0 0
      %1106 = vmatpush1.bf16.msra.mxu0 0
      %1107 = vmatprep.subr.bf16.mxu0 0
      %1108 = vmatpush1.bf16.msra.mxu0 0
      %1109 = vmatprep.subr.bf16.mxu0 0
      %1110 = vmatpush1.bf16.msra.mxu0 0
      %1111 = vmatprep.subr.bf16.mxu0 0
      %1112 = vmatpush1.bf16.msra.mxu0 0
      %1113 = vmatprep.subr.bf16.mxu0 0
      %1114 = vmatpush1.bf16.msra.mxu0 0
      %1115 = vmatprep.subr.bf16.mxu0 0
      %1116 = vmatpush1.bf16.msra.mxu0 %v1097
      %1117 = vmatprep.subr.bf16.mxu0 0
      %1118 = vmatpush1.bf16.msra.mxu0 %v1096
      %1119 = vmatprep.subr.bf16.mxu0 0
      %1120 = vmatpush2.bf16.msra.mxu0 0
      %1121 = vmatprep.subr.bf16.mxu0 0
      %1122 = vmatpush2.bf16.msra.mxu0 0
      %1123 = vmatprep.subr.bf16.mxu0 0
      %1124 = vmatpush2.bf16.msra.mxu0 0
      %1125 = vmatprep.subr.bf16.mxu0 0
      %1126 = vmatpush2.bf16.msra.mxu0 0
      %1127 = vmatprep.subr.bf16.mxu0 0
      %1128 = vmatpush2.bf16.msra.mxu0 0
      %1129 = vmatprep.subr.bf16.mxu0 0
      %1130 = vmatpush2.bf16.msra.mxu0 0
      %1131 = vmatprep.subr.bf16.mxu0 0
      %1132 = vmatpush2.bf16.msra.mxu0 0
      %1133 = vmatprep.subr.bf16.mxu0 0
      %1134 = vmatpush2.bf16.msra.mxu0 0
      %1135 = vmatprep.mubr.bf16.mxu0 0
      %1136 = vmatmul.mubr.bf16.gmra.mxu0 %v1101
      %v1137 = vpop.f32.mrf.mxu0
      %v1138 = vadd.f32 0.0, %v1137
      %v1139 = vpop.f32.mrf.mxu0
      %v1140 = vpop.f32.mrf.mxu0
      %v1141 = vpop.f32.mrf.mxu0
      %1142 = vdwg.mxu0
      %s1143 = scalar_lea.vmem %s3, 5
      %v1144 = vld [vmem:[%s1143] sm:$0x1]
      %s1145 = scalar_lea.vmem %s4, 5
      %v1146 = vld [vmem:[%s1145] sm:$0x1]
      %v1147 = vmul.f32 %v1138, %v624
      %v1148 = vsel %vm614, %v1147, 0.0
      %v1149 = vrot.slane %v1148, 4
      %v1150 = vadd.f32 %v1148, %v1149
      %v1151 = vrot.slane %v1150, 2
      %v1152 = vadd.f32 %v1150, %v1151
      %v1153 = vrot.slane %v1152, 1
      %v1154 = vadd.f32 %v1152, %v1153
      %v1155 = vmul.f32 %v1147, %v1138
      %v1156 = vsel %vm614, %v1155, 0.0
      %v1157 = vrot.slane %v1156, 4
      %v1158 = vadd.f32 %v1156, %v1157
      %v1159 = vrot.slane %v1158, 2
      %v1160 = vadd.f32 %v1158, %v1159
      %v1161 = vrot.slane %v1160, 1
      %v1162 = vadd.f32 %v1160, %v1161
      %v1163 = vmul.f32 %v1154, 0.125
      %v1164 = vmul.f32 %v1162, 0.125
      %v1165 = vmul.f32 %v1163, %v1163
      %v1166 = vsub.f32 %v1164, %v1165
      %v1167 = vsub.f32 %v1138, %v1163
      %v1168 = vadd.f32 %v1166, 1e-05
      %v1169 = vrsqrt.pop %v1168
      %v1170 = vmul.f32 %v1167, %v1169
      %v1172 = vlaneseq
      %v1173 = vshrl.u32 %v1172, 7
      %v1174 = vsub.s32 0, %v1173
      %v1175 = vrot.slane %v1144, %v1174
      %v1177 = vmul.f32 %v1170, %v1175
      %v1179 = vlaneseq
      %v1180 = vshrl.u32 %v1179, 7
      %v1181 = vsub.s32 0, %v1180
      %v1182 = vrot.slane %v1146, %v1181
      %v1184 = vadd.f32 %v1177, %v1182
      %v1185 = vmax.f32 %v1184, 0.0
      %v1186 = vpack.c.bf16 %v1185, %v1185
      %v1187 = vld [vmem:[%s5] sm:$0xf]
      %v1188 = vld [vmem:[%s5 + $0x4] sm:$0xf]
      %v1189 = vld [vmem:[%s5 + $0x8] sm:$0xf]
      %v1190 = vld [vmem:[%s5 + $0xc] sm:$0xf]
      %v1191 = vld [vmem:[%s6] sm:$0x1]
      %v1193 = vlaneseq
      %v1194 = vshrl.u32 %v1193, 7
      %v1195 = vsub.s32 0, %v1194
      %v1196 = vrot.slane %v1191, %v1195
      %v1202 = vunpack.c.l.b16 %v1187
      %v1203 = vunpack.c.l.b16 %v1188
      %v1204 = vunpack.c.l.b16 %v1189
      %v1205 = vunpack.c.l.b16 %v1190
      %v1206 = vpack.c.b16 %v1203, %v1202
      %v1207 = vpack.c.b16 %v1205, %v1204
      %v1211 = vsel %vm614, %v1186, 0
      %1213 = vmatprep.subr.bf16.mxu0 0
      %1214 = vmatpush1.bf16.msra.mxu0 0
      %1215 = vmatprep.subr.bf16.mxu0 0
      %1216 = vmatpush1.bf16.msra.mxu0 0
      %1217 = vmatprep.subr.bf16.mxu0 0
      %1218 = vmatpush1.bf16.msra.mxu0 0
      %1219 = vmatprep.subr.bf16.mxu0 0
      %1220 = vmatpush1.bf16.msra.mxu0 0
      %1221 = vmatprep.subr.bf16.mxu0 0
      %1222 = vmatpush1.bf16.msra.mxu0 0
      %1223 = vmatprep.subr.bf16.mxu0 0
      %1224 = vmatpush1.bf16.msra.mxu0 0
      %1225 = vmatprep.subr.bf16.mxu0 0
      %1226 = vmatpush1.bf16.msra.mxu0 %v1207
      %1227 = vmatprep.subr.bf16.mxu0 0
      %1228 = vmatpush1.bf16.msra.mxu0 %v1206
      %1229 = vmatprep.subr.bf16.mxu0 0
      %1230 = vmatpush2.bf16.msra.mxu0 0
      %1231 = vmatprep.subr.bf16.mxu0 0
      %1232 = vmatpush2.bf16.msra.mxu0 0
      %1233 = vmatprep.subr.bf16.mxu0 0
      %1234 = vmatpush2.bf16.msra.mxu0 0
      %1235 = vmatprep.subr.bf16.mxu0 0
      %1236 = vmatpush2.bf16.msra.mxu0 0
      %1237 = vmatprep.subr.bf16.mxu0 0
      %1238 = vmatpush2.bf16.msra.mxu0 0
      %1239 = vmatprep.subr.bf16.mxu0 0
      %1240 = vmatpush2.bf16.msra.mxu0 0
      %1241 = vmatprep.subr.bf16.mxu0 0
      %1242 = vmatpush2.bf16.msra.mxu0 0
      %1243 = vmatprep.subr.bf16.mxu0 0
      %1244 = vmatpush2.bf16.msra.mxu0 0
      %1245 = vmatprep.mubr.bf16.mxu0 0
      %1246 = vmatmul.mubr.bf16.gmra.mxu0 %v1211
      %v1247 = vpop.f32.mrf.mxu0
      %v1248 = vadd.f32 %v1196, %v1247
      %v1249 = vpop.f32.mrf.mxu0
      %v1250 = vpop.f32.mrf.mxu0
      %v1251 = vpop.f32.mrf.mxu0
      %1252 = vdwg.mxu0
      %1253 = vst [vmem:[#allocation3] sm:$0xff] %v1248
    $region33: #{tpu_custom_call.1} parent=1 // pred_fallthru
      _
    // Predicated region
    $region34: #{tpu_custom_call.1} parent=1 // pred_check
      _
    $region35: #{tpu_custom_call.1} parent=1 // pred_check_branch
      %1255 = sbr.rel (0) target = $region37
    $region36: #{tpu_custom_call.1} parent=1 // pred_region
      %s1257 = ssub.s32 128, 128
      %1258 = vsyncadd [#allocation4], %s1257
      %s1260 = sshll.u32 [#allocation3], 4
      %s1261 = int_to_ptr.vmem [resolvable:$true] %s1260
      %1263 = dma.vmem_to_hbm [thread:$0]  %s1261, 128, %s7, [#allocation4]
    $region37: #{tpu_custom_call.1} parent=1 // pred_fallthru
      _
    // Predicated region
    $region38: #{tpu_custom_call.1} parent=1 // pred_check
      _
    $region39: #{tpu_custom_call.1} parent=1 // pred_check_branch
      %1265 = sbr.rel (0) target = $region41
    $region40: #{tpu_custom_call.1} parent=1 // pred_region
      %1266 = dma.done [#allocation4], 128
    $region41: #{tpu_custom_call.1} parent=1 // pred_fallthru
      _
    %1267 = vsyncpa [#allocation4], 1

</llo_original>
